<compile_context>
chip_gen: v6e
topology: v6e:2x2x1
jax: 0.10.0
libtpu: 0.0.40
codegen_flags: <defaults>
</compile_context>

<pallas_src>
import functools

import jax
import jax.numpy as jnp
from jax.experimental import pallas as pl
from jax.experimental.pallas import tpu as pltpu

_LANE = 128
_MAX_CHUNK = 512                       # lanes per inner chunk (keeps intermediates ~32 vregs)
_DOT_PREC = jax.lax.Precision.HIGHEST  # match the f32 reference explicitly


def _cdiv(a, b):
    return (a + b - 1) // b


def _ceil_to(x, m):
    return _cdiv(x, m) * m


def _mlp_kernel(x_ref, w1_ref, w2_ref, b2_ref, w3_ref, b3_ref, o_ref, *,
                n_chunks, chunk, m_valid):
    """Fused 3-layer MLP over one row tile (rows live on the lane axis).

    x_ref : (n_chunks, 8, chunk)   sublane rows = [xr0, xr1, xs0, xs1, 1, 0, 0, 0]
    w1_ref: (64, 8)                augmented W1^T (column 4 = b1)
    w2_ref: (64, 64)  b2_ref: (64, 1)
    w3_ref: (1, 64)   b3_ref: (1,) scalar in SMEM
    o_ref : (n_chunks, 1, chunk)   lane-dense output
    """
    w1 = w1_ref[...]
    w2 = w2_ref[...]
    w3 = w3_ref[...]
    b3 = b3_ref[0]
    # Hoisted once per grid step (JAX does not CSE broadcast_in_dim).
    b2_bc = jnp.broadcast_to(b2_ref[...], (64, chunk))
    rows_done = pl.program_id(0) * (n_chunks * chunk)

    def body(c, carry):
        # Skip chunks that lie entirely in the padded region.
        @pl.when(rows_done + c * chunk < m_valid)
        def _():
            x = x_ref[c]                                              # (8, chunk)
            # layer 1 (b1 folded into w1 via the ones-row of x)
            h1 = jnp.tanh(jnp.dot(w1, x, precision=_DOT_PREC,
                                  preferred_element_type=jnp.float32))
            # layer 2
            h2 = jnp.tanh(jnp.dot(w2, h1, precision=_DOT_PREC,
                                  preferred_element_type=jnp.float32) + b2_bc)
            # layer 3 -> lane-dense (1, chunk)
            t = jnp.dot(w3, h2, precision=_DOT_PREC,
                        preferred_element_type=jnp.float32) + b3
            o_ref[c] = t.astype(o_ref.dtype)
        return carry

    jax.lax.fori_loop(0, n_chunks, body, 0, unroll=(n_chunks <= 8))


@functools.partial(jax.jit, static_argnames=("tm",))
def travel_time_fcnn(x_r, x_s, params, *, tm=8192):
    """x_r, x_s: (B, N, 2) float32.  Returns T: (B, N, 1) float32."""
    w1, b1, w2, b2, w3, b3 = params
    B, N, _ = x_r.shape
    M = B * N

    # ---- tiling -------------------------------------------------------------
    chunk = min(_MAX_CHUNK, _ceil_to(M, _LANE))        # lanes per inner chunk
    n_chunk_total = _cdiv(M, chunk)
    chunks_per_tile = min(max(1, tm // chunk), n_chunk_total)
    if n_chunk_total >= 2:                             # >=2 grid steps for v7x megacore
        chunks_per_tile = max(1, min(chunks_per_tile, _cdiv(n_chunk_total, 2)))
    grid_steps = _cdiv(n_chunk_total, chunks_per_tile)
    n_chunk_pad = grid_steps * chunks_per_tile
    m_pad = n_chunk_pad * chunk

    # ---- single fused relayout: stacked feature-major input ------------------
    def to_kfc(x):                                     # (B, N, 2) -> (K, 2, chunk)
        x2 = jnp.pad(x.reshape(M, 2).astype(jnp.float32), ((0, m_pad - M), (0, 0)))
        return x2.reshape(n_chunk_pad, chunk, 2).transpose(0, 2, 1)

    x_feat = jnp.concatenate(
        [to_kfc(x_r), to_kfc(x_s),
         jnp.ones((n_chunk_pad, 1, chunk), jnp.float32),     # bias-1 row
         jnp.zeros((n_chunk_pad, 3, chunk), jnp.float32)],   # pad to 8 sublanes
        axis=1)                                              # (K, 8, chunk)

    # ---- augmented / transposed weights (tiny) --------------------------------
    w1_aug = jnp.concatenate(
        [w1.T.astype(jnp.float32),
         b1.reshape(64, 1).astype(jnp.float32),
         jnp.zeros((64, 3), jnp.float32)], axis=1)           # (64, 8)
    w2_t = w2.T.astype(jnp.float32)                          # (64, 64)
    b2_t = b2.reshape(64, 1).astype(jnp.float32)             # (64, 1)
    w3_t = w3.T.astype(jnp.float32)                          # (1, 64)
    b3_s = b3.reshape(-1).astype(jnp.float32)                # (1,) scalar -> SMEM

    const = lambda i: (0, 0)
    kernel = functools.partial(_mlp_kernel, n_chunks=chunks_per_tile,
                               chunk=chunk, m_valid=M)

    out = pl.pallas_call(
        kernel,
        out_shape=jax.ShapeDtypeStruct((n_chunk_pad, 1, chunk), jnp.float32),
        grid_spec=pltpu.PrefetchScalarGridSpec(
            num_scalar_prefetch=0,
            grid=(grid_steps,),
            in_specs=[
                pl.BlockSpec((chunks_per_tile, 8, chunk), lambda i: (i, 0, 0)),
                pl.BlockSpec((64, 8), const),                       # W1 augmented
                pl.BlockSpec((64, 64), const),                      # W2^T
                pl.BlockSpec((64, 1), const),                       # b2^T
                pl.BlockSpec((1, 64), const),                       # W3^T
                pl.BlockSpec(memory_space=pltpu.MemorySpace.SMEM),  # b3 scalar
            ],
            out_specs=pl.BlockSpec((chunks_per_tile, 1, chunk),
                                   lambda i: (i, 0, 0)),
        ),
        compiler_params=pltpu.CompilerParams(
            dimension_semantics=("parallel",),
        ),
    )(x_feat, w1_aug, w2_t, b2_t, w3_t, b3_s)

    return out.reshape(m_pad)[:M].reshape(B, N, 1)


def init_params(key):
    """Deterministic init mimicking nn.Linear default (U[-1/sqrt(fan_in), +])."""
    ks = jax.random.split(key, 6)

    def lin(kw, kb, fan_in, fan_out):
        bound = 1.0 / jnp.sqrt(fan_in)
        w = jax.random.uniform(kw, (fan_in, fan_out), jnp.float32, -bound, bound)
        b = jax.random.uniform(kb, (1, fan_out), jnp.float32, -bound, bound)
        return w, b

    w1, b1 = lin(ks[0], ks[1], 4, 64)
    w2, b2 = lin(ks[2], ks[3], 64, 64)
    w3, b3 = lin(ks[4], ks[5], 64, 1)
    return (w1, b1, w2, b2, w3, b3)


def _reference(x_r, x_s, params):
    w1, b1, w2, b2, w3, b3 = params
    hp = jax.lax.Precision.HIGHEST
    f = jnp.concatenate([x_r, x_s], axis=2)
    h = jnp.tanh(jnp.dot(f, w1, precision=hp) + b1)
    h = jnp.tanh(jnp.dot(h, w2, precision=hp) + b2)
    return jnp.dot(h, w3, precision=hp) + b3


if __name__ == "__main__":
    key = jax.random.PRNGKey(0)
    k_p, k_r, k_s = jax.random.split(key, 3)
    params = init_params(k_p)

    # Primary small case.
    B, N = 2, 64
    x_r = jax.random.normal(k_r, (B, N, 2), jnp.float32)
    x_s = jax.random.normal(k_s, (B, N, 2), jnp.float32)
    T = jax.block_until_ready(travel_time_fcnn(x_r, x_s, params))
    T_ref = _reference(x_r, x_s, params)
    assert T.shape == (B, N, 1), T.shape
    assert jnp.allclose(T, T_ref, atol=1e-5, rtol=1e-4), "mismatch vs reference"

    # Ragged case exercising the padded / skipped-chunk path.
    B2, N2 = 1, 1200
    x_r2 = jax.random.normal(jax.random.PRNGKey(7), (B2, N2, 2), jnp.float32)
    x_s2 = jax.random.normal(jax.random.PRNGKey(11), (B2, N2, 2), jnp.float32)
    T2 = jax.block_until_ready(travel_time_fcnn(x_r2, x_s2, params))
    T2_ref = _reference(x_r2, x_s2, params)
    assert T2.shape == (B2, N2, 1), T2.shape
    assert jnp.allclose(T2, T2_ref, atol=1e-5, rtol=1e-4), "mismatch (padded path)"

    print("KERNEL_OK")
</pallas_src>

<mosaic_0001>
module attributes {stable_mosaic.version = 11 : i64} {
  func.func @_mlp_kernel(%arg0: i32, %arg1: memref<1x8x128xf32, #tpu.memory_space<vmem>>, %arg2: memref<64x8xf32, #tpu.memory_space<vmem>>, %arg3: memref<64x64xf32, #tpu.memory_space<vmem>>, %arg4: memref<64x1xf32, #tpu.memory_space<vmem>>, %arg5: memref<1x64xf32, #tpu.memory_space<vmem>>, %arg6: memref<1xf32, #tpu.memory_space<smem>>, %arg7: memref<1x1x128xf32, #tpu.memory_space<vmem>>) attributes {dimension_semantics = [#tpu.dimension_semantics<parallel>], iteration_bounds = array<i64: 1>, scalar_prefetch = 0 : i64, scratch_operands = 0 : i64, tpu.core_type = #tpu.core_type<tc>, window_params = [{transform_indices = @transform_0, window_bounds = array<i64: 1, 8, 128>}, {pipeline_mode = #tpu.pipeline_mode<synchronous>, transform_indices = @transform_1, window_bounds = array<i64: 64, 8>}, {pipeline_mode = #tpu.pipeline_mode<synchronous>, transform_indices = @transform_2, window_bounds = array<i64: 64, 64>}, {pipeline_mode = #tpu.pipeline_mode<synchronous>, transform_indices = @transform_3, window_bounds = array<i64: 64, 1>}, {pipeline_mode = #tpu.pipeline_mode<synchronous>, transform_indices = @transform_4, window_bounds = array<i64: 1, 64>}, {transform_indices = @transform_5, window_bounds = array<i64: 1>}, {transform_indices = @transform_6, window_bounds = array<i64: 1, 1, 128>}]} {
    %c0 = arith.constant 0 : index
    %c0_0 = arith.constant 0 : index
    %0 = vector.load %arg2[%c0, %c0_0] : memref<64x8xf32, #tpu.memory_space<vmem>>, vector<64x8xf32>
    %c0_1 = arith.constant 0 : index
    %c0_2 = arith.constant 0 : index
    %1 = vector.load %arg3[%c0_1, %c0_2] : memref<64x64xf32, #tpu.memory_space<vmem>>, vector<64x64xf32>
    %c0_3 = arith.constant 0 : index
    %c0_4 = arith.constant 0 : index
    %2 = vector.load %arg5[%c0_3, %c0_4] : memref<1x64xf32, #tpu.memory_space<vmem>>, vector<1x64xf32>
    %c0_5 = arith.constant 0 : index
    %3 = memref.load %arg6[%c0_5] : memref<1xf32, #tpu.memory_space<smem>>
    %c0_6 = arith.constant 0 : index
    %c0_7 = arith.constant 0 : index
    %4 = vector.load %arg4[%c0_6, %c0_7] : memref<64x1xf32, #tpu.memory_space<vmem>>, vector<64x1xf32>
    %5 = vector.shape_cast %4 : vector<64x1xf32> to vector<64x1xf32>
    %6 = vector.broadcast %5 : vector<64x1xf32> to vector<64x128xf32>
    %c128_i32 = arith.constant 128 : i32
    %7 = arith.muli %arg0, %c128_i32 : i32
    %c0_i32 = arith.constant 0 : i32
    %c128_i32_8 = arith.constant 128 : i32
    %8 = arith.muli %c0_i32, %c128_i32_8 : i32
    %9 = arith.addi %7, %8 : i32
    %c128_i32_9 = arith.constant 128 : i32
    %10 = arith.cmpi slt, %9, %c128_i32_9 : i32
    %11 = arith.extui %10 : i1 to i32
    %c0_i32_10 = arith.constant 0 : i32
    %12 = arith.cmpi ne, %11, %c0_i32_10 : i32
    scf.if %12 {
      %13 = arith.index_cast %c0_i32 : i32 to index
      %c0_11 = arith.constant 0 : index
      %c0_12 = arith.constant 0 : index
      %14 = vector.load %arg1[%13, %c0_11, %c0_12] : memref<1x8x128xf32, #tpu.memory_space<vmem>>, vector<1x8x128xf32>
      %15 = vector.shape_cast %14 : vector<1x8x128xf32> to vector<8x128xf32>
      %cst = arith.constant dense<0.000000e+00> : vector<64x128xf32>
      %16 = tpu.matmul %0, %15, %cst {dimension_numbers = #tpu.dot_dimension_numbers<[1], [0], [0], [1], [0, 0, 1, 1], [], []>, precision = #tpu.contract_precision<fp32>} : vector<64x8xf32>, vector<8x128xf32>, vector<64x128xf32> -> vector<64x128xf32>
      %17 = math.tanh %16 : vector<64x128xf32>
      %cst_13 = arith.constant dense<0.000000e+00> : vector<64x128xf32>
      %18 = tpu.matmul %1, %17, %cst_13 {dimension_numbers = #tpu.dot_dimension_numbers<[1], [0], [0], [1], [0, 0, 1, 1], [], []>, precision = #tpu.contract_precision<fp32>} : vector<64x64xf32>, vector<64x128xf32>, vector<64x128xf32> -> vector<64x128xf32>
      %19 = arith.addf %18, %6 : vector<64x128xf32>
      %20 = math.tanh %19 : vector<64x128xf32>
      %cst_14 = arith.constant dense<0.000000e+00> : vector<1x128xf32>
      %21 = tpu.matmul %2, %20, %cst_14 {dimension_numbers = #tpu.dot_dimension_numbers<[1], [0], [0], [1], [0, 0, 1, 1], [], []>, precision = #tpu.contract_precision<fp32>} : vector<1x64xf32>, vector<64x128xf32>, vector<1x128xf32> -> vector<1x128xf32>
      %22 = vector.broadcast %3 : f32 to vector<1x128xf32>
      %23 = arith.addf %21, %22 : vector<1x128xf32>
      %24 = arith.index_cast %c0_i32 : i32 to index
      %c0_15 = arith.constant 0 : index
      %c0_16 = arith.constant 0 : index
      %25 = vector.load %arg7[%24, %c0_15, %c0_16] : memref<1x1x128xf32, #tpu.memory_space<vmem>>, vector<1x1x128xf32>
      %26 = vector.shape_cast %25 : vector<1x1x128xf32> to vector<1x128xf32>
      %27 = vector.shape_cast %23 : vector<1x128xf32> to vector<1x1x128xf32>
      tpu.vector_store %arg7[%24, %c0_15, %c0_16], %27 {strides = array<i32>} : memref<1x1x128xf32, #tpu.memory_space<vmem>>, vector<1x1x128xf32>,
    } else {
    }
    %c1_i32 = arith.constant 1 : i32
    return
  }
  func.func @transform_0(%arg0: i32) -> (i32, i32, i32) {
    %c0_i32 = arith.constant 0 : i32
    %c0_i32_0 = arith.constant 0 : i32
    %c0_i32_1 = arith.constant 0 : i32
    return %arg0, %c0_i32, %c0_i32_0 : i32, i32, i32
  }
  func.func @transform_1(%arg0: i32) -> (i32, i32) {
    %c0_i32 = arith.constant 0 : i32
    %c0_i32_0 = arith.constant 0 : i32
    %c0_i32_1 = arith.constant 0 : i32
    return %c0_i32, %c0_i32_0 : i32, i32
  }
  func.func @transform_2(%arg0: i32) -> (i32, i32) {
    %c0_i32 = arith.constant 0 : i32
    %c0_i32_0 = arith.constant 0 : i32
    %c0_i32_1 = arith.constant 0 : i32
    return %c0_i32, %c0_i32_0 : i32, i32
  }
  func.func @transform_3(%arg0: i32) -> (i32, i32) {
    %c0_i32 = arith.constant 0 : i32
    %c0_i32_0 = arith.constant 0 : i32
    %c0_i32_1 = arith.constant 0 : i32
    return %c0_i32, %c0_i32_0 : i32, i32
  }
  func.func @transform_4(%arg0: i32) -> (i32, i32) {
    %c0_i32 = arith.constant 0 : i32
    %c0_i32_0 = arith.constant 0 : i32
    %c0_i32_1 = arith.constant 0 : i32
    return %c0_i32, %c0_i32_0 : i32, i32
  }
  func.func @transform_5(%arg0: i32) -> i32 {
    %c0_i32 = arith.constant 0 : i32
    %c0_i32_0 = arith.constant 0 : i32
    return %c0_i32 : i32
  }
  func.func @transform_6(%arg0: i32) -> (i32, i32, i32) {
    %c0_i32 = arith.constant 0 : i32
    %c0_i32_0 = arith.constant 0 : i32
    %c0_i32_1 = arith.constant 0 : i32
    return %arg0, %c0_i32, %c0_i32_0 : i32, i32, i32
  }
}

</mosaic_0001>

<llo_original>
// kernel: travel_time_fcnn.1
$region0: #{travel_time_fcnn.1}
  #allocation0 [shape = 'u32[]', space=smem, size = 0x4, offset = 0x4, fixed_abs, tag = 'smem constant byte address 0x4 - core index']
  #allocation1 [shape = 'u32[144,128]{1,0:T(1,128)}', space=vmem, size = 0x12000, scoped, tag = 'internal scratch']
  #allocation2 [shape = 'f32[1]{0:T(128)S(6)}', space=smem, size = 0x200, scoped, tag = 'scoped memory for travel_time_fcnn.1']
  %s0 = inlined_call_operand.vmem [shape: f32[1,8,128], index: 0, kind: input, shape index: {}]
  %s1 = inlined_call_operand.vmem [shape: f32[64,8], index: 1, kind: input, shape index: {}]
  %s2 = inlined_call_operand.vmem [shape: f32[64,64], index: 2, kind: input, shape index: {}]
  %s3 = inlined_call_operand.vmem [shape: f32[64,1], index: 3, kind: input, shape index: {}]
  %s4 = inlined_call_operand.vmem [shape: f32[1,64], index: 4, kind: input, shape index: {}]
  %s5 = inlined_call_operand.<no memory space> [shape: f32[1], index: 5, kind: input, shape index: {}]
  %s6 = inlined_call_operand.vmem [shape: f32[1,1,128], index: 6, kind: output, shape index: {}]
  %s7 = sld [smem:[#allocation0]]
  $region38: #{travel_time_fcnn.1} parent=0
    _
  %s9 = ssub.s32 1, %s7
  %s10 = scalar_select 0, %s9, %s7
  %11 = sst [smem:[#allocation2]] %s5
  // Predicated region
  $region2: #{travel_time_fcnn.1} parent=0 // pred_check
    _
  $region3: #{travel_time_fcnn.1} parent=0 // pred_check_branch
    %13 = sbr.rel (0) target = $region5
  $region4: #{travel_time_fcnn.1} parent=0 // pred_region
    _
  $region5: #{travel_time_fcnn.1} parent=0 // pred_fallthru
    _
  // Predicated region
  $region6: #{travel_time_fcnn.1} parent=0 // pred_check
    _
  $region7: #{travel_time_fcnn.1} parent=0 // pred_check_branch
    %15 = sbr.rel (0) target = $region9
  $region8: #{travel_time_fcnn.1} parent=0 // pred_region
    _
  $region9: #{travel_time_fcnn.1} parent=0 // pred_fallthru
    _
  // Predicated region
  $region10: #{travel_time_fcnn.1} parent=0 // pred_check
    _
  $region11: #{travel_time_fcnn.1} parent=0 // pred_check_branch
    %17 = sbr.rel (0) target = $region13
  $region12: #{travel_time_fcnn.1} parent=0 // pred_region
    _
  $region13: #{travel_time_fcnn.1} parent=0 // pred_fallthru
    _
  // Predicated region
  $region14: #{travel_time_fcnn.1} parent=0 // pred_check
    _
  $region15: #{travel_time_fcnn.1} parent=0 // pred_check_branch
    %19 = sbr.rel (0) target = $region17
  $region16: #{travel_time_fcnn.1} parent=0 // pred_region
    _
  $region17: #{travel_time_fcnn.1} parent=0 // pred_fallthru
    _
  // Predicated region
  $region18: #{travel_time_fcnn.1} parent=0 // pred_check
    _
  $region19: #{travel_time_fcnn.1} parent=0 // pred_check_branch
    %21 = sbr.rel (0) target = $region21
  $region20: #{travel_time_fcnn.1} parent=0 // pred_region
    _
  $region21: #{travel_time_fcnn.1} parent=0 // pred_fallthru
    _
  // Predicated region
  $region22: #{travel_time_fcnn.1} parent=0 // pred_check
    _
  $region23: #{travel_time_fcnn.1} parent=0 // pred_check_branch
    %23 = sbr.rel (0) target = $region25
  $region24: #{travel_time_fcnn.1} parent=0 // pred_region
    _
  $region25: #{travel_time_fcnn.1} parent=0 // pred_fallthru
    _
  %v24 = vld [vmem:[%s1] sm:$0xff]
  %v25 = vld [vmem:[%s1 + $0x8] sm:$0xff]
  %v26 = vld [vmem:[%s1 + $0x10] sm:$0xff]
  %v27 = vld [vmem:[%s1 + $0x18] sm:$0xff]
  %v28 = vld [vmem:[%s1 + $0x20] sm:$0xff]
  %v29 = vld [vmem:[%s1 + $0x28] sm:$0xff]
  %v30 = vld [vmem:[%s1 + $0x30] sm:$0xff]
  %v31 = vld [vmem:[%s1 + $0x38] sm:$0xff]
  %v32 = vld [vmem:[%s2] sm:$0xff]
  %v33 = vld [vmem:[%s2 + $0x8] sm:$0xff]
  %v34 = vld [vmem:[%s2 + $0x10] sm:$0xff]
  %v35 = vld [vmem:[%s2 + $0x18] sm:$0xff]
  %v36 = vld [vmem:[%s2 + $0x20] sm:$0xff]
  %v37 = vld [vmem:[%s2 + $0x28] sm:$0xff]
  %v38 = vld [vmem:[%s2 + $0x30] sm:$0xff]
  %v39 = vld [vmem:[%s2 + $0x38] sm:$0xff]
  %v40 = vld [vmem:[%s4] sm:$0x1]
  %s41 = sld [smem:[#allocation2]]
  %v42 = vld [vmem:[%s3] sm:$0xff]
  %v43 = vld [vmem:[%s3 + $0x8] sm:$0xff]
  %v44 = vld [vmem:[%s3 + $0x10] sm:$0xff]
  %v45 = vld [vmem:[%s3 + $0x18] sm:$0xff]
  %v46 = vld [vmem:[%s3 + $0x20] sm:$0xff]
  %v47 = vld [vmem:[%s3 + $0x28] sm:$0xff]
  %v48 = vld [vmem:[%s3 + $0x30] sm:$0xff]
  %v49 = vld [vmem:[%s3 + $0x38] sm:$0xff]
  %51 = vset.pattern.permute.xlu0 0
  %52 = vperm.xlu0 %51, %v42
  %v53 = vpop.permute.xlu0 %52
  %56 = vset.pattern.permute.xlu0 0
  %57 = vperm.xlu0 %56, %v43
  %v58 = vpop.permute.xlu0 %57
  %61 = vset.pattern.permute.xlu0 0
  %62 = vperm.xlu0 %61, %v44
  %v63 = vpop.permute.xlu0 %62
  %66 = vset.pattern.permute.xlu0 0
  %67 = vperm.xlu0 %66, %v45
  %v68 = vpop.permute.xlu0 %67
  %71 = vset.pattern.permute.xlu0 0
  %72 = vperm.xlu0 %71, %v46
  %v73 = vpop.permute.xlu0 %72
  %76 = vset.pattern.permute.xlu0 0
  %77 = vperm.xlu0 %76, %v47
  %v78 = vpop.permute.xlu0 %77
  %81 = vset.pattern.permute.xlu0 0
  %82 = vperm.xlu0 %81, %v48
  %v83 = vpop.permute.xlu0 %82
  %86 = vset.pattern.permute.xlu0 0
  %87 = vperm.xlu0 %86, %v49
  %v88 = vpop.permute.xlu0 %87
  %s90 = smul.u32 0, 128
  %p91 = scmp.lt.s32.totalorder %s90, 128
  // Predicated region
  $region26: #{travel_time_fcnn.1} parent=0 // pred_check
    %p92 = pneg %p91
  $region27: #{travel_time_fcnn.1} parent=0 // pred_check_branch
    %94 = sbr.rel (%p92) target = $region29
  $region28: #{travel_time_fcnn.1} parent=0 // pred_region
    %v95 = vld [vmem:[%s0] sm:$0xff]
    %vm96 = vcmask 64512
    %v98 = vsel %vm96, %v24, 0
    %v101 = vsel %vm96, %v25, 0
    %v104 = vsel %vm96, %v26, 0
    %v107 = vsel %vm96, %v27, 0
    %v110 = vsel %vm96, %v28, 0
    %v113 = vsel %vm96, %v29, 0
    %v116 = vsel %vm96, %v30, 0
    %v119 = vsel %vm96, %v31, 0
    %121 = vmatprep.subr.mxu0 0.0
    %122 = vmatpush1.msra.mxu0 0.0
    %123 = vmatprep.subr.mxu0 0.0
    %124 = vmatpush1.msra.mxu0 0.0
    %125 = vmatprep.subr.mxu0 0.0
    %126 = vmatpush1.msra.mxu0 0.0
    %127 = vmatprep.subr.mxu0 0.0
    %128 = vmatpush1.msra.mxu0 0.0
    %129 = vmatprep.subr.mxu0 0.0
    %130 = vmatpush1.msra.mxu0 0.0
    %131 = vmatprep.subr.mxu0 0.0
    %132 = vmatpush1.msra.mxu0 0.0
    %133 = vmatprep.subr.mxu0 0.0
    %134 = vmatpush1.msra.mxu0 0.0
    %135 = vmatprep.subr.mxu0 0.0
    %136 = vmatpush1.msra.mxu0 0.0
    %137 = vmatprep.subr.mxu0 0.0
    %138 = vmatpush1.msra.mxu0 0.0
    %139 = vmatprep.subr.mxu0 0.0
    %140 = vmatpush1.msra.mxu0 0.0
    %141 = vmatprep.subr.mxu0 0.0
    %142 = vmatpush1.msra.mxu0 0.0
    %143 = vmatprep.subr.mxu0 0.0
    %144 = vmatpush1.msra.mxu0 0.0
    %145 = vmatprep.subr.mxu0 0.0
    %146 = vmatpush1.msra.mxu0 0.0
    %147 = vmatprep.subr.mxu0 0.0
    %148 = vmatpush1.msra.mxu0 0.0
    %149 = vmatprep.subr.mxu0 0.0
    %150 = vmatpush1.msra.mxu0 0.0
    %151 = vmatprep.subr.mxu0 0.0
    %v152 = vand.u32 %v95, 4294901760
    %153 = vmatpush1.msra.mxu0 %v152
    %154 = vmatprep.subr.mxu0 0.0
    %155 = vmatpush2.msra.mxu0 0.0
    %156 = vmatprep.subr.mxu0 0.0
    %157 = vmatpush2.msra.mxu0 0.0
    %158 = vmatprep.subr.mxu0 0.0
    %159 = vmatpush2.msra.mxu0 0.0
    %160 = vmatprep.subr.mxu0 0.0
    %161 = vmatpush2.msra.mxu0 0.0
    %162 = vmatprep.subr.mxu0 0.0
    %163 = vmatpush2.msra.mxu0 0.0
    %164 = vmatprep.subr.mxu0 0.0
    %165 = vmatpush2.msra.mxu0 0.0
    %166 = vmatprep.subr.mxu0 0.0
    %167 = vmatpush2.msra.mxu0 0.0
    %168 = vmatprep.subr.mxu0 0.0
    %169 = vmatpush2.msra.mxu0 0.0
    %170 = vmatprep.subr.mxu0 0.0
    %171 = vmatpush2.msra.mxu0 0.0
    %172 = vmatprep.subr.mxu0 0.0
    %173 = vmatpush2.msra.mxu0 0.0
    %174 = vmatprep.subr.mxu0 0.0
    %175 = vmatpush2.msra.mxu0 0.0
    %176 = vmatprep.subr.mxu0 0.0
    %177 = vmatpush2.msra.mxu0 0.0
    %178 = vmatprep.subr.mxu0 0.0
    %179 = vmatpush2.msra.mxu0 0.0
    %180 = vmatprep.subr.mxu0 0.0
    %181 = vmatpush2.msra.mxu0 0.0
    %182 = vmatprep.subr.mxu0 0.0
    %183 = vmatpush2.msra.mxu0 0.0
    %184 = vmatprep.subr.mxu0 0.0
    %185 = vmatpush2.msra.mxu0 0.0
    %186 = vmatprep.mubr.f32.mxu0 0.0
    %v187 = vand.u32 %v98, 4294901760
    %v188 = vsub.f32 %v98, %v187
    %v189 = vand.u32 %v188, 4294901760
    %v190 = vsub.f32 %v188, %v189
    %v191 = vand.u32 %v190, 4294901760
    %192 = vmatmul.mubr.f32.gmra.mxu0 %v191
    %v193 = vpop.f32.mrf.mxu0
    %v194 = vadd.f32 0.0, %v193
    %v195 = vpop.f32.mrf.mxu0
    %196 = vmatprep.mubr.f32.mxu0 0.0
    %v197 = vand.u32 %v101, 4294901760
    %v198 = vsub.f32 %v101, %v197
    %v199 = vand.u32 %v198, 4294901760
    %v200 = vsub.f32 %v198, %v199
    %v201 = vand.u32 %v200, 4294901760
    %202 = vmatmul.mubr.f32.gmra.mxu0 %v201
    %v203 = vpop.f32.mrf.mxu0
    %v204 = vadd.f32 0.0, %v203
    %v205 = vpop.f32.mrf.mxu0
    %206 = vmatprep.mubr.f32.mxu0 0.0
    %v207 = vand.u32 %v104, 4294901760
    %v208 = vsub.f32 %v104, %v207
    %v209 = vand.u32 %v208, 4294901760
    %v210 = vsub.f32 %v208, %v209
    %v211 = vand.u32 %v210, 4294901760
    %212 = vmatmul.mubr.f32.gmra.mxu0 %v211
    %v213 = vpop.f32.mrf.mxu0
    %v214 = vadd.f32 0.0, %v213
    %v215 = vpop.f32.mrf.mxu0
    %216 = vmatprep.mubr.f32.mxu0 0.0
    %v217 = vand.u32 %v107, 4294901760
    %v218 = vsub.f32 %v107, %v217
    %v219 = vand.u32 %v218, 4294901760
    %v220 = vsub.f32 %v218, %v219
    %v221 = vand.u32 %v220, 4294901760
    %222 = vmatmul.mubr.f32.gmra.mxu0 %v221
    %v223 = vpop.f32.mrf.mxu0
    %v224 = vadd.f32 0.0, %v223
    %v225 = vpop.f32.mrf.mxu0
    %226 = vmatprep.mubr.f32.mxu0 0.0
    %v227 = vand.u32 %v110, 4294901760
    %v228 = vsub.f32 %v110, %v227
    %v229 = vand.u32 %v228, 4294901760
    %v230 = vsub.f32 %v228, %v229
    %v231 = vand.u32 %v230, 4294901760
    %232 = vmatmul.mubr.f32.gmra.mxu0 %v231
    %v233 = vpop.f32.mrf.mxu0
    %v234 = vadd.f32 0.0, %v233
    %v235 = vpop.f32.mrf.mxu0
    %236 = vmatprep.mubr.f32.mxu0 0.0
    %v237 = vand.u32 %v113, 4294901760
    %v238 = vsub.f32 %v113, %v237
    %v239 = vand.u32 %v238, 4294901760
    %v240 = vsub.f32 %v238, %v239
    %v241 = vand.u32 %v240, 4294901760
    %242 = vmatmul.mubr.f32.gmra.mxu0 %v241
    %v243 = vpop.f32.mrf.mxu0
    %v244 = vadd.f32 0.0, %v243
    %v245 = vpop.f32.mrf.mxu0
    %246 = vmatprep.mubr.f32.mxu0 0.0
    %v247 = vand.u32 %v116, 4294901760
    %v248 = vsub.f32 %v116, %v247
    %v249 = vand.u32 %v248, 4294901760
    %v250 = vsub.f32 %v248, %v249
    %v251 = vand.u32 %v250, 4294901760
    %252 = vmatmul.mubr.f32.gmra.mxu0 %v251
    %v253 = vpop.f32.mrf.mxu0
    %v254 = vadd.f32 0.0, %v253
    %v255 = vpop.f32.mrf.mxu0
    %256 = vmatprep.mubr.f32.mxu0 0.0
    %v257 = vand.u32 %v119, 4294901760
    %v258 = vsub.f32 %v119, %v257
    %v259 = vand.u32 %v258, 4294901760
    %v260 = vsub.f32 %v258, %v259
    %v261 = vand.u32 %v260, 4294901760
    %262 = vmatmul.mubr.f32.gmra.mxu0 %v261
    %v263 = vpop.f32.mrf.mxu0
    %v264 = vadd.f32 0.0, %v263
    %v265 = vpop.f32.mrf.mxu0
    %266 = vdwg.mxu0
    %267 = vmatprep.subr.mxu0 0.0
    %268 = vmatpush1.msra.mxu0 0.0
    %269 = vmatprep.subr.mxu0 0.0
    %270 = vmatpush1.msra.mxu0 0.0
    %271 = vmatprep.subr.mxu0 0.0
    %272 = vmatpush1.msra.mxu0 0.0
    %273 = vmatprep.subr.mxu0 0.0
    %274 = vmatpush1.msra.mxu0 0.0
    %275 = vmatprep.subr.mxu0 0.0
    %276 = vmatpush1.msra.mxu0 0.0
    %277 = vmatprep.subr.mxu0 0.0
    %278 = vmatpush1.msra.mxu0 0.0
    %279 = vmatprep.subr.mxu0 0.0
    %280 = vmatpush1.msra.mxu0 0.0
    %281 = vmatprep.subr.mxu0 0.0
    %282 = vmatpush1.msra.mxu0 0.0
    %283 = vmatprep.subr.mxu0 0.0
    %284 = vmatpush1.msra.mxu0 0.0
    %285 = vmatprep.subr.mxu0 0.0
    %286 = vmatpush1.msra.mxu0 0.0
    %287 = vmatprep.subr.mxu0 0.0
    %288 = vmatpush1.msra.mxu0 0.0
    %289 = vmatprep.subr.mxu0 0.0
    %290 = vmatpush1.msra.mxu0 0.0
    %291 = vmatprep.subr.mxu0 0.0
    %292 = vmatpush1.msra.mxu0 0.0
    %293 = vmatprep.subr.mxu0 0.0
    %294 = vmatpush1.msra.mxu0 0.0
    %295 = vmatprep.subr.mxu0 0.0
    %296 = vmatpush1.msra.mxu0 0.0
    %297 = vmatprep.subr.mxu0 0.0
    %v298 = vand.u32 %v95, 4294901760
    %v299 = vsub.f32 %v95, %v298
    %v300 = vand.u32 %v299, 4294901760
    %v301 = vsub.f32 %v299, %v300
    %v302 = vand.u32 %v301, 4294901760
    %303 = vmatpush1.msra.mxu0 %v302
    %304 = vmatprep.subr.mxu0 0.0
    %305 = vmatpush2.msra.mxu0 0.0
    %306 = vmatprep.subr.mxu0 0.0
    %307 = vmatpush2.msra.mxu0 0.0
    %308 = vmatprep.subr.mxu0 0.0
    %309 = vmatpush2.msra.mxu0 0.0
    %310 = vmatprep.subr.mxu0 0.0
    %311 = vmatpush2.msra.mxu0 0.0
    %312 = vmatprep.subr.mxu0 0.0
    %313 = vmatpush2.msra.mxu0 0.0
    %314 = vmatprep.subr.mxu0 0.0
    %315 = vmatpush2.msra.mxu0 0.0
    %316 = vmatprep.subr.mxu0 0.0
    %317 = vmatpush2.msra.mxu0 0.0
    %318 = vmatprep.subr.mxu0 0.0
    %319 = vmatpush2.msra.mxu0 0.0
    %320 = vmatprep.subr.mxu0 0.0
    %321 = vmatpush2.msra.mxu0 0.0
    %322 = vmatprep.subr.mxu0 0.0
    %323 = vmatpush2.msra.mxu0 0.0
    %324 = vmatprep.subr.mxu0 0.0
    %325 = vmatpush2.msra.mxu0 0.0
    %326 = vmatprep.subr.mxu0 0.0
    %327 = vmatpush2.msra.mxu0 0.0
    %328 = vmatprep.subr.mxu0 0.0
    %329 = vmatpush2.msra.mxu0 0.0
    %330 = vmatprep.subr.mxu0 0.0
    %331 = vmatpush2.msra.mxu0 0.0
    %332 = vmatprep.subr.mxu0 0.0
    %333 = vmatpush2.msra.mxu0 0.0
    %334 = vmatprep.subr.mxu0 0.0
    %335 = vmatpush2.msra.mxu0 0.0
    %336 = vmatprep.mubr.f32.mxu0 0.0
    %v337 = vand.u32 %v98, 4294901760
    %338 = vmatmul.mubr.f32.gmra.mxu0 %v337
    %v339 = vpop.f32.mrf.mxu0
    %v340 = vadd.f32 %v194, %v339
    %v341 = vpop.f32.mrf.mxu0
    %342 = vmatprep.mubr.f32.mxu0 0.0
    %v343 = vand.u32 %v101, 4294901760
    %344 = vmatmul.mubr.f32.gmra.mxu0 %v343
    %v345 = vpop.f32.mrf.mxu0
    %v346 = vadd.f32 %v204, %v345
    %v347 = vpop.f32.mrf.mxu0
    %348 = vmatprep.mubr.f32.mxu0 0.0
    %v349 = vand.u32 %v104, 4294901760
    %350 = vmatmul.mubr.f32.gmra.mxu0 %v349
    %v351 = vpop.f32.mrf.mxu0
    %v352 = vadd.f32 %v214, %v351
    %v353 = vpop.f32.mrf.mxu0
    %354 = vmatprep.mubr.f32.mxu0 0.0
    %v355 = vand.u32 %v107, 4294901760
    %356 = vmatmul.mubr.f32.gmra.mxu0 %v355
    %v357 = vpop.f32.mrf.mxu0
    %v358 = vadd.f32 %v224, %v357
    %v359 = vpop.f32.mrf.mxu0
    %360 = vmatprep.mubr.f32.mxu0 0.0
    %v361 = vand.u32 %v110, 4294901760
    %362 = vmatmul.mubr.f32.gmra.mxu0 %v361
    %v363 = vpop.f32.mrf.mxu0
    %v364 = vadd.f32 %v234, %v363
    %v365 = vpop.f32.mrf.mxu0
    %366 = vmatprep.mubr.f32.mxu0 0.0
    %v367 = vand.u32 %v113, 4294901760
    %368 = vmatmul.mubr.f32.gmra.mxu0 %v367
    %v369 = vpop.f32.mrf.mxu0
    %v370 = vadd.f32 %v244, %v369
    %v371 = vpop.f32.mrf.mxu0
    %372 = vmatprep.mubr.f32.mxu0 0.0
    %v373 = vand.u32 %v116, 4294901760
    %374 = vmatmul.mubr.f32.gmra.mxu0 %v373
    %v375 = vpop.f32.mrf.mxu0
    %v376 = vadd.f32 %v254, %v375
    %v377 = vpop.f32.mrf.mxu0
    %378 = vmatprep.mubr.f32.mxu0 0.0
    %v379 = vand.u32 %v119, 4294901760
    %380 = vmatmul.mubr.f32.gmra.mxu0 %v379
    %v381 = vpop.f32.mrf.mxu0
    %v382 = vadd.f32 %v264, %v381
    %v383 = vpop.f32.mrf.mxu0
    %384 = vdwg.mxu0
    %385 = vmatprep.subr.mxu0 0.0
    %386 = vmatpush1.msra.mxu0 0.0
    %387 = vmatprep.subr.mxu0 0.0
    %388 = vmatpush1.msra.mxu0 0.0
    %389 = vmatprep.subr.mxu0 0.0
    %390 = vmatpush1.msra.mxu0 0.0
    %391 = vmatprep.subr.mxu0 0.0
    %392 = vmatpush1.msra.mxu0 0.0
    %393 = vmatprep.subr.mxu0 0.0
    %394 = vmatpush1.msra.mxu0 0.0
    %395 = vmatprep.subr.mxu0 0.0
    %396 = vmatpush1.msra.mxu0 0.0
    %397 = vmatprep.subr.mxu0 0.0
    %398 = vmatpush1.msra.mxu0 0.0
    %399 = vmatprep.subr.mxu0 0.0
    %400 = vmatpush1.msra.mxu0 0.0
    %401 = vmatprep.subr.mxu0 0.0
    %402 = vmatpush1.msra.mxu0 0.0
    %403 = vmatprep.subr.mxu0 0.0
    %404 = vmatpush1.msra.mxu0 0.0
    %405 = vmatprep.subr.mxu0 0.0
    %406 = vmatpush1.msra.mxu0 0.0
    %407 = vmatprep.subr.mxu0 0.0
    %408 = vmatpush1.msra.mxu0 0.0
    %409 = vmatprep.subr.mxu0 0.0
    %410 = vmatpush1.msra.mxu0 0.0
    %411 = vmatprep.subr.mxu0 0.0
    %412 = vmatpush1.msra.mxu0 0.0
    %413 = vmatprep.subr.mxu0 0.0
    %414 = vmatpush1.msra.mxu0 0.0
    %415 = vmatprep.subr.mxu0 0.0
    %v416 = vand.u32 %v95, 4294901760
    %v417 = vsub.f32 %v95, %v416
    %418 = vmatpush1.msra.mxu0 %v417
    %419 = vmatprep.subr.mxu0 0.0
    %420 = vmatpush2.msra.mxu0 0.0
    %421 = vmatprep.subr.mxu0 0.0
    %422 = vmatpush2.msra.mxu0 0.0
    %423 = vmatprep.subr.mxu0 0.0
    %424 = vmatpush2.msra.mxu0 0.0
    %425 = vmatprep.subr.mxu0 0.0
    %426 = vmatpush2.msra.mxu0 0.0
    %427 = vmatprep.subr.mxu0 0.0
    %428 = vmatpush2.msra.mxu0 0.0
    %429 = vmatprep.subr.mxu0 0.0
    %430 = vmatpush2.msra.mxu0 0.0
    %431 = vmatprep.subr.mxu0 0.0
    %432 = vmatpush2.msra.mxu0 0.0
    %433 = vmatprep.subr.mxu0 0.0
    %434 = vmatpush2.msra.mxu0 0.0
    %435 = vmatprep.subr.mxu0 0.0
    %436 = vmatpush2.msra.mxu0 0.0
    %437 = vmatprep.subr.mxu0 0.0
    %438 = vmatpush2.msra.mxu0 0.0
    %439 = vmatprep.subr.mxu0 0.0
    %440 = vmatpush2.msra.mxu0 0.0
    %441 = vmatprep.subr.mxu0 0.0
    %442 = vmatpush2.msra.mxu0 0.0
    %443 = vmatprep.subr.mxu0 0.0
    %444 = vmatpush2.msra.mxu0 0.0
    %445 = vmatprep.subr.mxu0 0.0
    %446 = vmatpush2.msra.mxu0 0.0
    %447 = vmatprep.subr.mxu0 0.0
    %448 = vmatpush2.msra.mxu0 0.0
    %449 = vmatprep.subr.mxu0 0.0
    %450 = vmatpush2.msra.mxu0 0.0
    %451 = vmatprep.mubr.f32.mxu0 0.0
    %v452 = vand.u32 %v98, 4294901760
    %v453 = vsub.f32 %v98, %v452
    %454 = vmatmul.mubr.f32.gmra.mxu0 %v453
    %v455 = vpop.f32.mrf.mxu0
    %v456 = vadd.f32 %v340, %v455
    %v457 = vpop.f32.mrf.mxu0
    %458 = vmatprep.mubr.f32.mxu0 0.0
    %v459 = vand.u32 %v101, 4294901760
    %v460 = vsub.f32 %v101, %v459
    %461 = vmatmul.mubr.f32.gmra.mxu0 %v460
    %v462 = vpop.f32.mrf.mxu0
    %v463 = vadd.f32 %v346, %v462
    %v464 = vpop.f32.mrf.mxu0
    %465 = vmatprep.mubr.f32.mxu0 0.0
    %v466 = vand.u32 %v104, 4294901760
    %v467 = vsub.f32 %v104, %v466
    %468 = vmatmul.mubr.f32.gmra.mxu0 %v467
    %v469 = vpop.f32.mrf.mxu0
    %v470 = vadd.f32 %v352, %v469
    %v471 = vpop.f32.mrf.mxu0
    %472 = vmatprep.mubr.f32.mxu0 0.0
    %v473 = vand.u32 %v107, 4294901760
    %v474 = vsub.f32 %v107, %v473
    %475 = vmatmul.mubr.f32.gmra.mxu0 %v474
    %v476 = vpop.f32.mrf.mxu0
    %v477 = vadd.f32 %v358, %v476
    %v478 = vpop.f32.mrf.mxu0
    %479 = vmatprep.mubr.f32.mxu0 0.0
    %v480 = vand.u32 %v110, 4294901760
    %v481 = vsub.f32 %v110, %v480
    %482 = vmatmul.mubr.f32.gmra.mxu0 %v481
    %v483 = vpop.f32.mrf.mxu0
    %v484 = vadd.f32 %v364, %v483
    %v485 = vpop.f32.mrf.mxu0
    %486 = vmatprep.mubr.f32.mxu0 0.0
    %v487 = vand.u32 %v113, 4294901760
    %v488 = vsub.f32 %v113, %v487
    %489 = vmatmul.mubr.f32.gmra.mxu0 %v488
    %v490 = vpop.f32.mrf.mxu0
    %v491 = vadd.f32 %v370, %v490
    %v492 = vpop.f32.mrf.mxu0
    %493 = vmatprep.mubr.f32.mxu0 0.0
    %v494 = vand.u32 %v116, 4294901760
    %v495 = vsub.f32 %v116, %v494
    %496 = vmatmul.mubr.f32.gmra.mxu0 %v495
    %v497 = vpop.f32.mrf.mxu0
    %v498 = vadd.f32 %v376, %v497
    %v499 = vpop.f32.mrf.mxu0
    %500 = vmatprep.mubr.f32.mxu0 0.0
    %v501 = vand.u32 %v119, 4294901760
    %v502 = vsub.f32 %v119, %v501
    %503 = vmatmul.mubr.f32.gmra.mxu0 %v502
    %v504 = vpop.f32.mrf.mxu0
    %v505 = vadd.f32 %v382, %v504
    %v506 = vpop.f32.mrf.mxu0
    %507 = vdwg.mxu0
    %508 = vmatprep.subr.mxu0 0.0
    %509 = vmatpush1.msra.mxu0 0.0
    %510 = vmatprep.subr.mxu0 0.0
    %511 = vmatpush1.msra.mxu0 0.0
    %512 = vmatprep.subr.mxu0 0.0
    %513 = vmatpush1.msra.mxu0 0.0
    %514 = vmatprep.subr.mxu0 0.0
    %515 = vmatpush1.msra.mxu0 0.0
    %516 = vmatprep.subr.mxu0 0.0
    %517 = vmatpush1.msra.mxu0 0.0
    %518 = vmatprep.subr.mxu0 0.0
    %519 = vmatpush1.msra.mxu0 0.0
    %520 = vmatprep.subr.mxu0 0.0
    %521 = vmatpush1.msra.mxu0 0.0
    %522 = vmatprep.subr.mxu0 0.0
    %523 = vmatpush1.msra.mxu0 0.0
    %524 = vmatprep.subr.mxu0 0.0
    %525 = vmatpush1.msra.mxu0 0.0
    %526 = vmatprep.subr.mxu0 0.0
    %527 = vmatpush1.msra.mxu0 0.0
    %528 = vmatprep.subr.mxu0 0.0
    %529 = vmatpush1.msra.mxu0 0.0
    %530 = vmatprep.subr.mxu0 0.0
    %531 = vmatpush1.msra.mxu0 0.0
    %532 = vmatprep.subr.mxu0 0.0
    %533 = vmatpush1.msra.mxu0 0.0
    %534 = vmatprep.subr.mxu0 0.0
    %535 = vmatpush1.msra.mxu0 0.0
    %536 = vmatprep.subr.mxu0 0.0
    %537 = vmatpush1.msra.mxu0 0.0
    %538 = vmatprep.subr.mxu0 0.0
    %v539 = vand.u32 %v95, 4294901760
    %540 = vmatpush1.msra.mxu0 %v539
    %541 = vmatprep.subr.mxu0 0.0
    %542 = vmatpush2.msra.mxu0 0.0
    %543 = vmatprep.subr.mxu0 0.0
    %544 = vmatpush2.msra.mxu0 0.0
    %545 = vmatprep.subr.mxu0 0.0
    %546 = vmatpush2.msra.mxu0 0.0
    %547 = vmatprep.subr.mxu0 0.0
    %548 = vmatpush2.msra.mxu0 0.0
    %549 = vmatprep.subr.mxu0 0.0
    %550 = vmatpush2.msra.mxu0 0.0
    %551 = vmatprep.subr.mxu0 0.0
    %552 = vmatpush2.msra.mxu0 0.0
    %553 = vmatprep.subr.mxu0 0.0
    %554 = vmatpush2.msra.mxu0 0.0
    %555 = vmatprep.subr.mxu0 0.0
    %556 = vmatpush2.msra.mxu0 0.0
    %557 = vmatprep.subr.mxu0 0.0
    %558 = vmatpush2.msra.mxu0 0.0
    %559 = vmatprep.subr.mxu0 0.0
    %560 = vmatpush2.msra.mxu0 0.0
    %561 = vmatprep.subr.mxu0 0.0
    %562 = vmatpush2.msra.mxu0 0.0
    %563 = vmatprep.subr.mxu0 0.0
    %564 = vmatpush2.msra.mxu0 0.0
    %565 = vmatprep.subr.mxu0 0.0
    %566 = vmatpush2.msra.mxu0 0.0
    %567 = vmatprep.subr.mxu0 0.0
    %568 = vmatpush2.msra.mxu0 0.0
    %569 = vmatprep.subr.mxu0 0.0
    %570 = vmatpush2.msra.mxu0 0.0
    %571 = vmatprep.subr.mxu0 0.0
    %572 = vmatpush2.msra.mxu0 0.0
    %573 = vmatprep.mubr.f32.mxu0 0.0
    %v574 = vand.u32 %v98, 4294901760
    %v575 = vsub.f32 %v98, %v574
    %v576 = vand.u32 %v575, 4294901760
    %577 = vmatmul.mubr.f32.gmra.mxu0 %v576
    %v578 = vpop.f32.mrf.mxu0
    %v579 = vadd.f32 %v456, %v578
    %v580 = vpop.f32.mrf.mxu0
    %581 = vmatprep.mubr.f32.mxu0 0.0
    %v582 = vand.u32 %v101, 4294901760
    %v583 = vsub.f32 %v101, %v582
    %v584 = vand.u32 %v583, 4294901760
    %585 = vmatmul.mubr.f32.gmra.mxu0 %v584
    %v586 = vpop.f32.mrf.mxu0
    %v587 = vadd.f32 %v463, %v586
    %v588 = vpop.f32.mrf.mxu0
    %589 = vmatprep.mubr.f32.mxu0 0.0
    %v590 = vand.u32 %v104, 4294901760
    %v591 = vsub.f32 %v104, %v590
    %v592 = vand.u32 %v591, 4294901760
    %593 = vmatmul.mubr.f32.gmra.mxu0 %v592
    %v594 = vpop.f32.mrf.mxu0
    %v595 = vadd.f32 %v470, %v594
    %v596 = vpop.f32.mrf.mxu0
    %597 = vmatprep.mubr.f32.mxu0 0.0
    %v598 = vand.u32 %v107, 4294901760
    %v599 = vsub.f32 %v107, %v598
    %v600 = vand.u32 %v599, 4294901760
    %601 = vmatmul.mubr.f32.gmra.mxu0 %v600
    %v602 = vpop.f32.mrf.mxu0
    %v603 = vadd.f32 %v477, %v602
    %v604 = vpop.f32.mrf.mxu0
    %605 = vmatprep.mubr.f32.mxu0 0.0
    %v606 = vand.u32 %v110, 4294901760
    %v607 = vsub.f32 %v110, %v606
    %v608 = vand.u32 %v607, 4294901760
    %609 = vmatmul.mubr.f32.gmra.mxu0 %v608
    %v610 = vpop.f32.mrf.mxu0
    %v611 = vadd.f32 %v484, %v610
    %v612 = vpop.f32.mrf.mxu0
    %613 = vmatprep.mubr.f32.mxu0 0.0
    %v614 = vand.u32 %v113, 4294901760
    %v615 = vsub.f32 %v113, %v614
    %v616 = vand.u32 %v615, 4294901760
    %617 = vmatmul.mubr.f32.gmra.mxu0 %v616
    %v618 = vpop.f32.mrf.mxu0
    %v619 = vadd.f32 %v491, %v618
    %v620 = vpop.f32.mrf.mxu0
    %621 = vmatprep.mubr.f32.mxu0 0.0
    %v622 = vand.u32 %v116, 4294901760
    %v623 = vsub.f32 %v116, %v622
    %v624 = vand.u32 %v623, 4294901760
    %625 = vmatmul.mubr.f32.gmra.mxu0 %v624
    %v626 = vpop.f32.mrf.mxu0
    %v627 = vadd.f32 %v498, %v626
    %v628 = vpop.f32.mrf.mxu0
    %629 = vmatprep.mubr.f32.mxu0 0.0
    %v630 = vand.u32 %v119, 4294901760
    %v631 = vsub.f32 %v119, %v630
    %v632 = vand.u32 %v631, 4294901760
    %633 = vmatmul.mubr.f32.gmra.mxu0 %v632
    %v634 = vpop.f32.mrf.mxu0
    %v635 = vadd.f32 %v505, %v634
    %v636 = vpop.f32.mrf.mxu0
    %637 = vdwg.mxu0
    %638 = vmatprep.subr.mxu0 0.0
    %639 = vmatpush1.msra.mxu0 0.0
    %640 = vmatprep.subr.mxu0 0.0
    %641 = vmatpush1.msra.mxu0 0.0
    %642 = vmatprep.subr.mxu0 0.0
    %643 = vmatpush1.msra.mxu0 0.0
    %644 = vmatprep.subr.mxu0 0.0
    %645 = vmatpush1.msra.mxu0 0.0
    %646 = vmatprep.subr.mxu0 0.0
    %647 = vmatpush1.msra.mxu0 0.0
    %648 = vmatprep.subr.mxu0 0.0
    %649 = vmatpush1.msra.mxu0 0.0
    %650 = vmatprep.subr.mxu0 0.0
    %651 = vmatpush1.msra.mxu0 0.0
    %652 = vmatprep.subr.mxu0 0.0
    %653 = vmatpush1.msra.mxu0 0.0
    %654 = vmatprep.subr.mxu0 0.0
    %655 = vmatpush1.msra.mxu0 0.0
    %656 = vmatprep.subr.mxu0 0.0
    %657 = vmatpush1.msra.mxu0 0.0
    %658 = vmatprep.subr.mxu0 0.0
    %659 = vmatpush1.msra.mxu0 0.0
    %660 = vmatprep.subr.mxu0 0.0
    %661 = vmatpush1.msra.mxu0 0.0
    %662 = vmatprep.subr.mxu0 0.0
    %663 = vmatpush1.msra.mxu0 0.0
    %664 = vmatprep.subr.mxu0 0.0
    %665 = vmatpush1.msra.mxu0 0.0
    %666 = vmatprep.subr.mxu0 0.0
    %667 = vmatpush1.msra.mxu0 0.0
    %668 = vmatprep.subr.mxu0 0.0
    %v669 = vand.u32 %v95, 4294901760
    %v670 = vsub.f32 %v95, %v669
    %v671 = vand.u32 %v670, 4294901760
    %672 = vmatpush1.msra.mxu0 %v671
    %673 = vmatprep.subr.mxu0 0.0
    %674 = vmatpush2.msra.mxu0 0.0
    %675 = vmatprep.subr.mxu0 0.0
    %676 = vmatpush2.msra.mxu0 0.0
    %677 = vmatprep.subr.mxu0 0.0
    %678 = vmatpush2.msra.mxu0 0.0
    %679 = vmatprep.subr.mxu0 0.0
    %680 = vmatpush2.msra.mxu0 0.0
    %681 = vmatprep.subr.mxu0 0.0
    %682 = vmatpush2.msra.mxu0 0.0
    %683 = vmatprep.subr.mxu0 0.0
    %684 = vmatpush2.msra.mxu0 0.0
    %685 = vmatprep.subr.mxu0 0.0
    %686 = vmatpush2.msra.mxu0 0.0
    %687 = vmatprep.subr.mxu0 0.0
    %688 = vmatpush2.msra.mxu0 0.0
    %689 = vmatprep.subr.mxu0 0.0
    %690 = vmatpush2.msra.mxu0 0.0
    %691 = vmatprep.subr.mxu0 0.0
    %692 = vmatpush2.msra.mxu0 0.0
    %693 = vmatprep.subr.mxu0 0.0
    %694 = vmatpush2.msra.mxu0 0.0
    %695 = vmatprep.subr.mxu0 0.0
    %696 = vmatpush2.msra.mxu0 0.0
    %697 = vmatprep.subr.mxu0 0.0
    %698 = vmatpush2.msra.mxu0 0.0
    %699 = vmatprep.subr.mxu0 0.0
    %700 = vmatpush2.msra.mxu0 0.0
    %701 = vmatprep.subr.mxu0 0.0
    %702 = vmatpush2.msra.mxu0 0.0
    %703 = vmatprep.subr.mxu0 0.0
    %704 = vmatpush2.msra.mxu0 0.0
    %705 = vmatprep.mubr.f32.mxu0 0.0
    %v706 = vand.u32 %v98, 4294901760
    %707 = vmatmul.mubr.f32.gmra.mxu0 %v706
    %v708 = vpop.f32.mrf.mxu0
    %v709 = vadd.f32 %v579, %v708
    %v710 = vpop.f32.mrf.mxu0
    %711 = vmatprep.mubr.f32.mxu0 0.0
    %v712 = vand.u32 %v101, 4294901760
    %713 = vmatmul.mubr.f32.gmra.mxu0 %v712
    %v714 = vpop.f32.mrf.mxu0
    %v715 = vadd.f32 %v587, %v714
    %v716 = vpop.f32.mrf.mxu0
    %717 = vmatprep.mubr.f32.mxu0 0.0
    %v718 = vand.u32 %v104, 4294901760
    %719 = vmatmul.mubr.f32.gmra.mxu0 %v718
    %v720 = vpop.f32.mrf.mxu0
    %v721 = vadd.f32 %v595, %v720
    %v722 = vpop.f32.mrf.mxu0
    %723 = vmatprep.mubr.f32.mxu0 0.0
    %v724 = vand.u32 %v107, 4294901760
    %725 = vmatmul.mubr.f32.gmra.mxu0 %v724
    %v726 = vpop.f32.mrf.mxu0
    %v727 = vadd.f32 %v603, %v726
    %v728 = vpop.f32.mrf.mxu0
    %729 = vmatprep.mubr.f32.mxu0 0.0
    %v730 = vand.u32 %v110, 4294901760
    %731 = vmatmul.mubr.f32.gmra.mxu0 %v730
    %v732 = vpop.f32.mrf.mxu0
    %v733 = vadd.f32 %v611, %v732
    %v734 = vpop.f32.mrf.mxu0
    %735 = vmatprep.mubr.f32.mxu0 0.0
    %v736 = vand.u32 %v113, 4294901760
    %737 = vmatmul.mubr.f32.gmra.mxu0 %v736
    %v738 = vpop.f32.mrf.mxu0
    %v739 = vadd.f32 %v619, %v738
    %v740 = vpop.f32.mrf.mxu0
    %741 = vmatprep.mubr.f32.mxu0 0.0
    %v742 = vand.u32 %v116, 4294901760
    %743 = vmatmul.mubr.f32.gmra.mxu0 %v742
    %v744 = vpop.f32.mrf.mxu0
    %v745 = vadd.f32 %v627, %v744
    %v746 = vpop.f32.mrf.mxu0
    %747 = vmatprep.mubr.f32.mxu0 0.0
    %v748 = vand.u32 %v119, 4294901760
    %749 = vmatmul.mubr.f32.gmra.mxu0 %v748
    %v750 = vpop.f32.mrf.mxu0
    %v751 = vadd.f32 %v635, %v750
    %v752 = vpop.f32.mrf.mxu0
    %753 = vdwg.mxu0
    %754 = vmatprep.subr.mxu0 0.0
    %755 = vmatpush1.msra.mxu0 0.0
    %756 = vmatprep.subr.mxu0 0.0
    %757 = vmatpush1.msra.mxu0 0.0
    %758 = vmatprep.subr.mxu0 0.0
    %759 = vmatpush1.msra.mxu0 0.0
    %760 = vmatprep.subr.mxu0 0.0
    %761 = vmatpush1.msra.mxu0 0.0
    %762 = vmatprep.subr.mxu0 0.0
    %763 = vmatpush1.msra.mxu0 0.0
    %764 = vmatprep.subr.mxu0 0.0
    %765 = vmatpush1.msra.mxu0 0.0
    %766 = vmatprep.subr.mxu0 0.0
    %767 = vmatpush1.msra.mxu0 0.0
    %768 = vmatprep.subr.mxu0 0.0
    %769 = vmatpush1.msra.mxu0 0.0
    %770 = vmatprep.subr.mxu0 0.0
    %771 = vmatpush1.msra.mxu0 0.0
    %772 = vmatprep.subr.mxu0 0.0
    %773 = vmatpush1.msra.mxu0 0.0
    %774 = vmatprep.subr.mxu0 0.0
    %775 = vmatpush1.msra.mxu0 0.0
    %776 = vmatprep.subr.mxu0 0.0
    %777 = vmatpush1.msra.mxu0 0.0
    %778 = vmatprep.subr.mxu0 0.0
    %779 = vmatpush1.msra.mxu0 0.0
    %780 = vmatprep.subr.mxu0 0.0
    %781 = vmatpush1.msra.mxu0 0.0
    %782 = vmatprep.subr.mxu0 0.0
    %783 = vmatpush1.msra.mxu0 0.0
    %784 = vmatprep.subr.mxu0 0.0
    %v785 = vand.u32 %v95, 4294901760
    %786 = vmatpush1.msra.mxu0 %v785
    %787 = vmatprep.subr.mxu0 0.0
    %788 = vmatpush2.msra.mxu0 0.0
    %789 = vmatprep.subr.mxu0 0.0
    %790 = vmatpush2.msra.mxu0 0.0
    %791 = vmatprep.subr.mxu0 0.0
    %792 = vmatpush2.msra.mxu0 0.0
    %793 = vmatprep.subr.mxu0 0.0
    %794 = vmatpush2.msra.mxu0 0.0
    %795 = vmatprep.subr.mxu0 0.0
    %796 = vmatpush2.msra.mxu0 0.0
    %797 = vmatprep.subr.mxu0 0.0
    %798 = vmatpush2.msra.mxu0 0.0
    %799 = vmatprep.subr.mxu0 0.0
    %800 = vmatpush2.msra.mxu0 0.0
    %801 = vmatprep.subr.mxu0 0.0
    %802 = vmatpush2.msra.mxu0 0.0
    %803 = vmatprep.subr.mxu0 0.0
    %804 = vmatpush2.msra.mxu0 0.0
    %805 = vmatprep.subr.mxu0 0.0
    %806 = vmatpush2.msra.mxu0 0.0
    %807 = vmatprep.subr.mxu0 0.0
    %808 = vmatpush2.msra.mxu0 0.0
    %809 = vmatprep.subr.mxu0 0.0
    %810 = vmatpush2.msra.mxu0 0.0
    %811 = vmatprep.subr.mxu0 0.0
    %812 = vmatpush2.msra.mxu0 0.0
    %813 = vmatprep.subr.mxu0 0.0
    %814 = vmatpush2.msra.mxu0 0.0
    %815 = vmatprep.subr.mxu0 0.0
    %816 = vmatpush2.msra.mxu0 0.0
    %817 = vmatprep.subr.mxu0 0.0
    %818 = vmatpush2.msra.mxu0 0.0
    %819 = vmatprep.mubr.f32.mxu0 0.0
    %v820 = vand.u32 %v98, 4294901760
    %821 = vmatmul.mubr.f32.gmra.mxu0 %v820
    %v822 = vpop.f32.mrf.mxu0
    %v823 = vadd.f32 %v709, %v822
    %v824 = vpop.f32.mrf.mxu0
    %825 = vmatprep.mubr.f32.mxu0 0.0
    %v826 = vand.u32 %v101, 4294901760
    %827 = vmatmul.mubr.f32.gmra.mxu0 %v826
    %v828 = vpop.f32.mrf.mxu0
    %v829 = vadd.f32 %v715, %v828
    %v830 = vpop.f32.mrf.mxu0
    %831 = vmatprep.mubr.f32.mxu0 0.0
    %v832 = vand.u32 %v104, 4294901760
    %833 = vmatmul.mubr.f32.gmra.mxu0 %v832
    %v834 = vpop.f32.mrf.mxu0
    %v835 = vadd.f32 %v721, %v834
    %v836 = vpop.f32.mrf.mxu0
    %837 = vmatprep.mubr.f32.mxu0 0.0
    %v838 = vand.u32 %v107, 4294901760
    %839 = vmatmul.mubr.f32.gmra.mxu0 %v838
    %v840 = vpop.f32.mrf.mxu0
    %v841 = vadd.f32 %v727, %v840
    %v842 = vpop.f32.mrf.mxu0
    %843 = vmatprep.mubr.f32.mxu0 0.0
    %v844 = vand.u32 %v110, 4294901760
    %845 = vmatmul.mubr.f32.gmra.mxu0 %v844
    %v846 = vpop.f32.mrf.mxu0
    %v847 = vadd.f32 %v733, %v846
    %v848 = vpop.f32.mrf.mxu0
    %849 = vmatprep.mubr.f32.mxu0 0.0
    %v850 = vand.u32 %v113, 4294901760
    %851 = vmatmul.mubr.f32.gmra.mxu0 %v850
    %v852 = vpop.f32.mrf.mxu0
    %v853 = vadd.f32 %v739, %v852
    %v854 = vpop.f32.mrf.mxu0
    %855 = vmatprep.mubr.f32.mxu0 0.0
    %v856 = vand.u32 %v116, 4294901760
    %857 = vmatmul.mubr.f32.gmra.mxu0 %v856
    %v858 = vpop.f32.mrf.mxu0
    %v859 = vadd.f32 %v745, %v858
    %v860 = vpop.f32.mrf.mxu0
    %861 = vmatprep.mubr.f32.mxu0 0.0
    %v862 = vand.u32 %v119, 4294901760
    %863 = vmatmul.mubr.f32.gmra.mxu0 %v862
    %v864 = vpop.f32.mrf.mxu0
    %v865 = vadd.f32 %v751, %v864
    %v866 = vpop.f32.mrf.mxu0
    %867 = vdwg.mxu0
    %v868 = vtanh.pop %v823
    %v869 = vtanh.pop %v829
    %v870 = vtanh.pop %v835
    %v871 = vtanh.pop %v841
    %v872 = vtanh.pop %v847
    %v873 = vtanh.pop %v853
    %v874 = vtanh.pop %v859
    %v875 = vtanh.pop %v865
    %vm876 = vcmask 523264
    %v878 = vsel %vm876, %v32, 0
    %v881 = vsel %vm876, %v33, 0
    %v884 = vsel %vm876, %v34, 0
    %v887 = vsel %vm876, %v35, 0
    %v890 = vsel %vm876, %v36, 0
    %v893 = vsel %vm876, %v37, 0
    %v896 = vsel %vm876, %v38, 0
    %v899 = vsel %vm876, %v39, 0
    %901 = vmatprep.subr.mxu0 0.0
    %902 = vmatpush1.msra.mxu0 0.0
    %903 = vmatprep.subr.mxu0 0.0
    %904 = vmatpush1.msra.mxu0 0.0
    %905 = vmatprep.subr.mxu0 0.0
    %906 = vmatpush1.msra.mxu0 0.0
    %907 = vmatprep.subr.mxu0 0.0
    %908 = vmatpush1.msra.mxu0 0.0
    %909 = vmatprep.subr.mxu0 0.0
    %910 = vmatpush1.msra.mxu0 0.0
    %911 = vmatprep.subr.mxu0 0.0
    %912 = vmatpush1.msra.mxu0 0.0
    %913 = vmatprep.subr.mxu0 0.0
    %914 = vmatpush1.msra.mxu0 0.0
    %915 = vmatprep.subr.mxu0 0.0
    %916 = vmatpush1.msra.mxu0 0.0
    %917 = vmatprep.subr.mxu0 0.0
    %v918 = vand.u32 %v875, 4294901760
    %919 = vmatpush1.msra.mxu0 %v918
    %920 = vmatprep.subr.mxu0 0.0
    %v921 = vand.u32 %v874, 4294901760
    %922 = vmatpush1.msra.mxu0 %v921
    %923 = vmatprep.subr.mxu0 0.0
    %v924 = vand.u32 %v873, 4294901760
    %925 = vmatpush1.msra.mxu0 %v924
    %926 = vmatprep.subr.mxu0 0.0
    %v927 = vand.u32 %v872, 4294901760
    %928 = vmatpush1.msra.mxu0 %v927
    %929 = vmatprep.subr.mxu0 0.0
    %v930 = vand.u32 %v871, 4294901760
    %931 = vmatpush1.msra.mxu0 %v930
    %932 = vmatprep.subr.mxu0 0.0
    %v933 = vand.u32 %v870, 4294901760
    %934 = vmatpush1.msra.mxu0 %v933
    %935 = vmatprep.subr.mxu0 0.0
    %v936 = vand.u32 %v869, 4294901760
    %937 = vmatpush1.msra.mxu0 %v936
    %938 = vmatprep.subr.mxu0 0.0
    %v939 = vand.u32 %v868, 4294901760
    %940 = vmatpush1.msra.mxu0 %v939
    %941 = vmatprep.subr.mxu0 0.0
    %942 = vmatpush2.msra.mxu0 0.0
    %943 = vmatprep.subr.mxu0 0.0
    %944 = vmatpush2.msra.mxu0 0.0
    %945 = vmatprep.subr.mxu0 0.0
    %946 = vmatpush2.msra.mxu0 0.0
    %947 = vmatprep.subr.mxu0 0.0
    %948 = vmatpush2.msra.mxu0 0.0
    %949 = vmatprep.subr.mxu0 0.0
    %950 = vmatpush2.msra.mxu0 0.0
    %951 = vmatprep.subr.mxu0 0.0
    %952 = vmatpush2.msra.mxu0 0.0
    %953 = vmatprep.subr.mxu0 0.0
    %954 = vmatpush2.msra.mxu0 0.0
    %955 = vmatprep.subr.mxu0 0.0
    %956 = vmatpush2.msra.mxu0 0.0
    %957 = vmatprep.subr.mxu0 0.0
    %958 = vmatpush2.msra.mxu0 0.0
    %959 = vmatprep.subr.mxu0 0.0
    %960 = vmatpush2.msra.mxu0 0.0
    %961 = vmatprep.subr.mxu0 0.0
    %962 = vmatpush2.msra.mxu0 0.0
    %963 = vmatprep.subr.mxu0 0.0
    %964 = vmatpush2.msra.mxu0 0.0
    %965 = vmatprep.subr.mxu0 0.0
    %966 = vmatpush2.msra.mxu0 0.0
    %967 = vmatprep.subr.mxu0 0.0
    %968 = vmatpush2.msra.mxu0 0.0
    %969 = vmatprep.subr.mxu0 0.0
    %970 = vmatpush2.msra.mxu0 0.0
    %971 = vmatprep.subr.mxu0 0.0
    %972 = vmatpush2.msra.mxu0 0.0
    %973 = vmatprep.mubr.f32.mxu0 0.0
    %v974 = vand.u32 %v878, 4294901760
    %v975 = vsub.f32 %v878, %v974
    %v976 = vand.u32 %v975, 4294901760
    %v977 = vsub.f32 %v975, %v976
    %v978 = vand.u32 %v977, 4294901760
    %979 = vmatmul.mubr.f32.gmra.mxu0 %v978
    %v980 = vpop.f32.mrf.mxu0
    %v981 = vadd.f32 %v53, %v980
    %v982 = vpop.f32.mrf.mxu0
    %983 = vmatprep.mubr.f32.mxu0 0.0
    %v984 = vand.u32 %v881, 4294901760
    %v985 = vsub.f32 %v881, %v984
    %v986 = vand.u32 %v985, 4294901760
    %v987 = vsub.f32 %v985, %v986
    %v988 = vand.u32 %v987, 4294901760
    %989 = vmatmul.mubr.f32.gmra.mxu0 %v988
    %v990 = vpop.f32.mrf.mxu0
    %v991 = vadd.f32 %v58, %v990
    %v992 = vpop.f32.mrf.mxu0
    %993 = vmatprep.mubr.f32.mxu0 0.0
    %v994 = vand.u32 %v884, 4294901760
    %v995 = vsub.f32 %v884, %v994
    %v996 = vand.u32 %v995, 4294901760
    %v997 = vsub.f32 %v995, %v996
    %v998 = vand.u32 %v997, 4294901760
    %999 = vmatmul.mubr.f32.gmra.mxu0 %v998
    %v1000 = vpop.f32.mrf.mxu0
    %v1001 = vadd.f32 %v63, %v1000
    %v1002 = vpop.f32.mrf.mxu0
    %1003 = vmatprep.mubr.f32.mxu0 0.0
    %v1004 = vand.u32 %v887, 4294901760
    %v1005 = vsub.f32 %v887, %v1004
    %v1006 = vand.u32 %v1005, 4294901760
    %v1007 = vsub.f32 %v1005, %v1006
    %v1008 = vand.u32 %v1007, 4294901760
    %1009 = vmatmul.mubr.f32.gmra.mxu0 %v1008
    %v1010 = vpop.f32.mrf.mxu0
    %v1011 = vadd.f32 %v68, %v1010
    %v1012 = vpop.f32.mrf.mxu0
    %1013 = vmatprep.mubr.f32.mxu0 0.0
    %v1014 = vand.u32 %v890, 4294901760
    %v1015 = vsub.f32 %v890, %v1014
    %v1016 = vand.u32 %v1015, 4294901760
    %v1017 = vsub.f32 %v1015, %v1016
    %v1018 = vand.u32 %v1017, 4294901760
    %1019 = vmatmul.mubr.f32.gmra.mxu0 %v1018
    %v1020 = vpop.f32.mrf.mxu0
    %v1021 = vadd.f32 %v73, %v1020
    %v1022 = vpop.f32.mrf.mxu0
    %1023 = vmatprep.mubr.f32.mxu0 0.0
    %v1024 = vand.u32 %v893, 4294901760
    %v1025 = vsub.f32 %v893, %v1024
    %v1026 = vand.u32 %v1025, 4294901760
    %v1027 = vsub.f32 %v1025, %v1026
    %v1028 = vand.u32 %v1027, 4294901760
    %1029 = vmatmul.mubr.f32.gmra.mxu0 %v1028
    %v1030 = vpop.f32.mrf.mxu0
    %v1031 = vadd.f32 %v78, %v1030
    %v1032 = vpop.f32.mrf.mxu0
    %1033 = vmatprep.mubr.f32.mxu0 0.0
    %v1034 = vand.u32 %v896, 4294901760
    %v1035 = vsub.f32 %v896, %v1034
    %v1036 = vand.u32 %v1035, 4294901760
    %v1037 = vsub.f32 %v1035, %v1036
    %v1038 = vand.u32 %v1037, 4294901760
    %1039 = vmatmul.mubr.f32.gmra.mxu0 %v1038
    %v1040 = vpop.f32.mrf.mxu0
    %v1041 = vadd.f32 %v83, %v1040
    %v1042 = vpop.f32.mrf.mxu0
    %1043 = vmatprep.mubr.f32.mxu0 0.0
    %v1044 = vand.u32 %v899, 4294901760
    %v1045 = vsub.f32 %v899, %v1044
    %v1046 = vand.u32 %v1045, 4294901760
    %v1047 = vsub.f32 %v1045, %v1046
    %v1048 = vand.u32 %v1047, 4294901760
    %1049 = vmatmul.mubr.f32.gmra.mxu0 %v1048
    %v1050 = vpop.f32.mrf.mxu0
    %v1051 = vadd.f32 %v88, %v1050
    %v1052 = vpop.f32.mrf.mxu0
    %1053 = vdwg.mxu0
    %1054 = vmatprep.subr.mxu0 0.0
    %1055 = vmatpush1.msra.mxu0 0.0
    %1056 = vmatprep.subr.mxu0 0.0
    %1057 = vmatpush1.msra.mxu0 0.0
    %1058 = vmatprep.subr.mxu0 0.0
    %1059 = vmatpush1.msra.mxu0 0.0
    %1060 = vmatprep.subr.mxu0 0.0
    %1061 = vmatpush1.msra.mxu0 0.0
    %1062 = vmatprep.subr.mxu0 0.0
    %1063 = vmatpush1.msra.mxu0 0.0
    %1064 = vmatprep.subr.mxu0 0.0
    %1065 = vmatpush1.msra.mxu0 0.0
    %1066 = vmatprep.subr.mxu0 0.0
    %1067 = vmatpush1.msra.mxu0 0.0
    %1068 = vmatprep.subr.mxu0 0.0
    %1069 = vmatpush1.msra.mxu0 0.0
    %1070 = vmatprep.subr.mxu0 0.0
    %v1071 = vand.u32 %v875, 4294901760
    %v1072 = vsub.f32 %v875, %v1071
    %v1073 = vand.u32 %v1072, 4294901760
    %v1074 = vsub.f32 %v1072, %v1073
    %v1075 = vand.u32 %v1074, 4294901760
    %1076 = vmatpush1.msra.mxu0 %v1075
    %1077 = vmatprep.subr.mxu0 0.0
    %v1078 = vand.u32 %v874, 4294901760
    %v1079 = vsub.f32 %v874, %v1078
    %v1080 = vand.u32 %v1079, 4294901760
    %v1081 = vsub.f32 %v1079, %v1080
    %v1082 = vand.u32 %v1081, 4294901760
    %1083 = vmatpush1.msra.mxu0 %v1082
    %1084 = vmatprep.subr.mxu0 0.0
    %v1085 = vand.u32 %v873, 4294901760
    %v1086 = vsub.f32 %v873, %v1085
    %v1087 = vand.u32 %v1086, 4294901760
    %v1088 = vsub.f32 %v1086, %v1087
    %v1089 = vand.u32 %v1088, 4294901760
    %1090 = vmatpush1.msra.mxu0 %v1089
    %1091 = vmatprep.subr.mxu0 0.0
    %v1092 = vand.u32 %v872, 4294901760
    %v1093 = vsub.f32 %v872, %v1092
    %v1094 = vand.u32 %v1093, 4294901760
    %v1095 = vsub.f32 %v1093, %v1094
    %v1096 = vand.u32 %v1095, 4294901760
    %1097 = vmatpush1.msra.mxu0 %v1096
    %1098 = vmatprep.subr.mxu0 0.0
    %v1099 = vand.u32 %v871, 4294901760
    %v1100 = vsub.f32 %v871, %v1099
    %v1101 = vand.u32 %v1100, 4294901760
    %v1102 = vsub.f32 %v1100, %v1101
    %v1103 = vand.u32 %v1102, 4294901760
    %1104 = vmatpush1.msra.mxu0 %v1103
    %1105 = vmatprep.subr.mxu0 0.0
    %v1106 = vand.u32 %v870, 4294901760
    %v1107 = vsub.f32 %v870, %v1106
    %v1108 = vand.u32 %v1107, 4294901760
    %v1109 = vsub.f32 %v1107, %v1108
    %v1110 = vand.u32 %v1109, 4294901760
    %1111 = vmatpush1.msra.mxu0 %v1110
    %1112 = vmatprep.subr.mxu0 0.0
    %v1113 = vand.u32 %v869, 4294901760
    %v1114 = vsub.f32 %v869, %v1113
    %v1115 = vand.u32 %v1114, 4294901760
    %v1116 = vsub.f32 %v1114, %v1115
    %v1117 = vand.u32 %v1116, 4294901760
    %1118 = vmatpush1.msra.mxu0 %v1117
    %1119 = vmatprep.subr.mxu0 0.0
    %v1120 = vand.u32 %v868, 4294901760
    %v1121 = vsub.f32 %v868, %v1120
    %v1122 = vand.u32 %v1121, 4294901760
    %v1123 = vsub.f32 %v1121, %v1122
    %v1124 = vand.u32 %v1123, 4294901760
    %1125 = vmatpush1.msra.mxu0 %v1124
    %1126 = vmatprep.subr.mxu0 0.0
    %1127 = vmatpush2.msra.mxu0 0.0
    %1128 = vmatprep.subr.mxu0 0.0
    %1129 = vmatpush2.msra.mxu0 0.0
    %1130 = vmatprep.subr.mxu0 0.0
    %1131 = vmatpush2.msra.mxu0 0.0
    %1132 = vmatprep.subr.mxu0 0.0
    %1133 = vmatpush2.msra.mxu0 0.0
    %1134 = vmatprep.subr.mxu0 0.0
    %1135 = vmatpush2.msra.mxu0 0.0
    %1136 = vmatprep.subr.mxu0 0.0
    %1137 = vmatpush2.msra.mxu0 0.0
    %1138 = vmatprep.subr.mxu0 0.0
    %1139 = vmatpush2.msra.mxu0 0.0
    %1140 = vmatprep.subr.mxu0 0.0
    %1141 = vmatpush2.msra.mxu0 0.0
    %1142 = vmatprep.subr.mxu0 0.0
    %1143 = vmatpush2.msra.mxu0 0.0
    %1144 = vmatprep.subr.mxu0 0.0
    %1145 = vmatpush2.msra.mxu0 0.0
    %1146 = vmatprep.subr.mxu0 0.0
    %1147 = vmatpush2.msra.mxu0 0.0
    %1148 = vmatprep.subr.mxu0 0.0
    %1149 = vmatpush2.msra.mxu0 0.0
    %1150 = vmatprep.subr.mxu0 0.0
    %1151 = vmatpush2.msra.mxu0 0.0
    %1152 = vmatprep.subr.mxu0 0.0
    %1153 = vmatpush2.msra.mxu0 0.0
    %1154 = vmatprep.subr.mxu0 0.0
    %1155 = vmatpush2.msra.mxu0 0.0
    %1156 = vmatprep.subr.mxu0 0.0
    %1157 = vmatpush2.msra.mxu0 0.0
    %1158 = vmatprep.mubr.f32.mxu0 0.0
    %v1159 = vand.u32 %v878, 4294901760
    %1160 = vmatmul.mubr.f32.gmra.mxu0 %v1159
    %v1161 = vpop.f32.mrf.mxu0
    %v1162 = vadd.f32 %v981, %v1161
    %v1163 = vpop.f32.mrf.mxu0
    %1164 = vmatprep.mubr.f32.mxu0 0.0
    %v1165 = vand.u32 %v881, 4294901760
    %1166 = vmatmul.mubr.f32.gmra.mxu0 %v1165
    %v1167 = vpop.f32.mrf.mxu0
    %v1168 = vadd.f32 %v991, %v1167
    %v1169 = vpop.f32.mrf.mxu0
    %1170 = vmatprep.mubr.f32.mxu0 0.0
    %v1171 = vand.u32 %v884, 4294901760
    %1172 = vmatmul.mubr.f32.gmra.mxu0 %v1171
    %v1173 = vpop.f32.mrf.mxu0
    %v1174 = vadd.f32 %v1001, %v1173
    %v1175 = vpop.f32.mrf.mxu0
    %1176 = vmatprep.mubr.f32.mxu0 0.0
    %v1177 = vand.u32 %v887, 4294901760
    %1178 = vmatmul.mubr.f32.gmra.mxu0 %v1177
    %v1179 = vpop.f32.mrf.mxu0
    %v1180 = vadd.f32 %v1011, %v1179
    %v1181 = vpop.f32.mrf.mxu0
    %1182 = vmatprep.mubr.f32.mxu0 0.0
    %v1183 = vand.u32 %v890, 4294901760
    %1184 = vmatmul.mubr.f32.gmra.mxu0 %v1183
    %v1185 = vpop.f32.mrf.mxu0
    %v1186 = vadd.f32 %v1021, %v1185
    %v1187 = vpop.f32.mrf.mxu0
    %1188 = vmatprep.mubr.f32.mxu0 0.0
    %v1189 = vand.u32 %v893, 4294901760
    %1190 = vmatmul.mubr.f32.gmra.mxu0 %v1189
    %v1191 = vpop.f32.mrf.mxu0
    %v1192 = vadd.f32 %v1031, %v1191
    %v1193 = vpop.f32.mrf.mxu0
    %1194 = vmatprep.mubr.f32.mxu0 0.0
    %v1195 = vand.u32 %v896, 4294901760
    %1196 = vmatmul.mubr.f32.gmra.mxu0 %v1195
    %v1197 = vpop.f32.mrf.mxu0
    %v1198 = vadd.f32 %v1041, %v1197
    %v1199 = vpop.f32.mrf.mxu0
    %1200 = vmatprep.mubr.f32.mxu0 0.0
    %v1201 = vand.u32 %v899, 4294901760
    %1202 = vmatmul.mubr.f32.gmra.mxu0 %v1201
    %v1203 = vpop.f32.mrf.mxu0
    %v1204 = vadd.f32 %v1051, %v1203
    %v1205 = vpop.f32.mrf.mxu0
    %1206 = vdwg.mxu0
    %1207 = vmatprep.subr.mxu0 0.0
    %1208 = vmatpush1.msra.mxu0 0.0
    %1209 = vmatprep.subr.mxu0 0.0
    %1210 = vmatpush1.msra.mxu0 0.0
    %1211 = vmatprep.subr.mxu0 0.0
    %1212 = vmatpush1.msra.mxu0 0.0
    %1213 = vmatprep.subr.mxu0 0.0
    %1214 = vmatpush1.msra.mxu0 0.0
    %1215 = vmatprep.subr.mxu0 0.0
    %1216 = vmatpush1.msra.mxu0 0.0
    %1217 = vmatprep.subr.mxu0 0.0
    %1218 = vmatpush1.msra.mxu0 0.0
    %1219 = vmatprep.subr.mxu0 0.0
    %1220 = vmatpush1.msra.mxu0 0.0
    %1221 = vmatprep.subr.mxu0 0.0
    %1222 = vmatpush1.msra.mxu0 0.0
    %1223 = vmatprep.subr.mxu0 0.0
    %v1224 = vand.u32 %v875, 4294901760
    %v1225 = vsub.f32 %v875, %v1224
    %1226 = vmatpush1.msra.mxu0 %v1225
    %1227 = vmatprep.subr.mxu0 0.0
    %v1228 = vand.u32 %v874, 4294901760
    %v1229 = vsub.f32 %v874, %v1228
    %1230 = vmatpush1.msra.mxu0 %v1229
    %1231 = vmatprep.subr.mxu0 0.0
    %v1232 = vand.u32 %v873, 4294901760
    %v1233 = vsub.f32 %v873, %v1232
    %1234 = vmatpush1.msra.mxu0 %v1233
    %1235 = vmatprep.subr.mxu0 0.0
    %v1236 = vand.u32 %v872, 4294901760
    %v1237 = vsub.f32 %v872, %v1236
    %1238 = vmatpush1.msra.mxu0 %v1237
    %1239 = vmatprep.subr.mxu0 0.0
    %v1240 = vand.u32 %v871, 4294901760
    %v1241 = vsub.f32 %v871, %v1240
    %1242 = vmatpush1.msra.mxu0 %v1241
    %1243 = vmatprep.subr.mxu0 0.0
    %v1244 = vand.u32 %v870, 4294901760
    %v1245 = vsub.f32 %v870, %v1244
    %1246 = vmatpush1.msra.mxu0 %v1245
    %1247 = vmatprep.subr.mxu0 0.0
    %v1248 = vand.u32 %v869, 4294901760
    %v1249 = vsub.f32 %v869, %v1248
    %1250 = vmatpush1.msra.mxu0 %v1249
    %1251 = vmatprep.subr.mxu0 0.0
    %v1252 = vand.u32 %v868, 4294901760
    %v1253 = vsub.f32 %v868, %v1252
    %1254 = vmatpush1.msra.mxu0 %v1253
    %1255 = vmatprep.subr.mxu0 0.0
    %1256 = vmatpush2.msra.mxu0 0.0
    %1257 = vmatprep.subr.mxu0 0.0
    %1258 = vmatpush2.msra.mxu0 0.0
    %1259 = vmatprep.subr.mxu0 0.0
    %1260 = vmatpush2.msra.mxu0 0.0
    %1261 = vmatprep.subr.mxu0 0.0
    %1262 = vmatpush2.msra.mxu0 0.0
    %1263 = vmatprep.subr.mxu0 0.0
    %1264 = vmatpush2.msra.mxu0 0.0
    %1265 = vmatprep.subr.mxu0 0.0
    %1266 = vmatpush2.msra.mxu0 0.0
    %1267 = vmatprep.subr.mxu0 0.0
    %1268 = vmatpush2.msra.mxu0 0.0
    %1269 = vmatprep.subr.mxu0 0.0
    %1270 = vmatpush2.msra.mxu0 0.0
    %1271 = vmatprep.subr.mxu0 0.0
    %1272 = vmatpush2.msra.mxu0 0.0
    %1273 = vmatprep.subr.mxu0 0.0
    %1274 = vmatpush2.msra.mxu0 0.0
    %1275 = vmatprep.subr.mxu0 0.0
    %1276 = vmatpush2.msra.mxu0 0.0
    %1277 = vmatprep.subr.mxu0 0.0
    %1278 = vmatpush2.msra.mxu0 0.0
    %1279 = vmatprep.subr.mxu0 0.0
    %1280 = vmatpush2.msra.mxu0 0.0
    %1281 = vmatprep.subr.mxu0 0.0
    %1282 = vmatpush2.msra.mxu0 0.0
    %1283 = vmatprep.subr.mxu0 0.0
    %1284 = vmatpush2.msra.mxu0 0.0
    %1285 = vmatprep.subr.mxu0 0.0
    %1286 = vmatpush2.msra.mxu0 0.0
    %1287 = vmatprep.mubr.f32.mxu0 0.0
    %v1288 = vand.u32 %v878, 4294901760
    %v1289 = vsub.f32 %v878, %v1288
    %1290 = vmatmul.mubr.f32.gmra.mxu0 %v1289
    %v1291 = vpop.f32.mrf.mxu0
    %v1292 = vadd.f32 %v1162, %v1291
    %v1293 = vpop.f32.mrf.mxu0
    %1294 = vmatprep.mubr.f32.mxu0 0.0
    %v1295 = vand.u32 %v881, 4294901760
    %v1296 = vsub.f32 %v881, %v1295
    %1297 = vmatmul.mubr.f32.gmra.mxu0 %v1296
    %v1298 = vpop.f32.mrf.mxu0
    %v1299 = vadd.f32 %v1168, %v1298
    %v1300 = vpop.f32.mrf.mxu0
    %1301 = vmatprep.mubr.f32.mxu0 0.0
    %v1302 = vand.u32 %v884, 4294901760
    %v1303 = vsub.f32 %v884, %v1302
    %1304 = vmatmul.mubr.f32.gmra.mxu0 %v1303
    %v1305 = vpop.f32.mrf.mxu0
    %v1306 = vadd.f32 %v1174, %v1305
    %v1307 = vpop.f32.mrf.mxu0
    %1308 = vmatprep.mubr.f32.mxu0 0.0
    %v1309 = vand.u32 %v887, 4294901760
    %v1310 = vsub.f32 %v887, %v1309
    %1311 = vmatmul.mubr.f32.gmra.mxu0 %v1310
    %v1312 = vpop.f32.mrf.mxu0
    %v1313 = vadd.f32 %v1180, %v1312
    %v1314 = vpop.f32.mrf.mxu0
    %1315 = vmatprep.mubr.f32.mxu0 0.0
    %v1316 = vand.u32 %v890, 4294901760
    %v1317 = vsub.f32 %v890, %v1316
    %1318 = vmatmul.mubr.f32.gmra.mxu0 %v1317
    %v1319 = vpop.f32.mrf.mxu0
    %v1320 = vadd.f32 %v1186, %v1319
    %v1321 = vpop.f32.mrf.mxu0
    %1322 = vmatprep.mubr.f32.mxu0 0.0
    %v1323 = vand.u32 %v893, 4294901760
    %v1324 = vsub.f32 %v893, %v1323
    %1325 = vmatmul.mubr.f32.gmra.mxu0 %v1324
    %v1326 = vpop.f32.mrf.mxu0
    %v1327 = vadd.f32 %v1192, %v1326
    %v1328 = vpop.f32.mrf.mxu0
    %1329 = vmatprep.mubr.f32.mxu0 0.0
    %v1330 = vand.u32 %v896, 4294901760
    %v1331 = vsub.f32 %v896, %v1330
    %1332 = vmatmul.mubr.f32.gmra.mxu0 %v1331
    %v1333 = vpop.f32.mrf.mxu0
    %v1334 = vadd.f32 %v1198, %v1333
    %v1335 = vpop.f32.mrf.mxu0
    %1336 = vmatprep.mubr.f32.mxu0 0.0
    %v1337 = vand.u32 %v899, 4294901760
    %v1338 = vsub.f32 %v899, %v1337
    %1339 = vmatmul.mubr.f32.gmra.mxu0 %v1338
    %v1340 = vpop.f32.mrf.mxu0
    %v1341 = vadd.f32 %v1204, %v1340
    %v1342 = vpop.f32.mrf.mxu0
    %1343 = vdwg.mxu0
    %1344 = vmatprep.subr.mxu0 0.0
    %1345 = vmatpush1.msra.mxu0 0.0
    %1346 = vmatprep.subr.mxu0 0.0
    %1347 = vmatpush1.msra.mxu0 0.0
    %1348 = vmatprep.subr.mxu0 0.0
    %1349 = vmatpush1.msra.mxu0 0.0
    %1350 = vmatprep.subr.mxu0 0.0
    %1351 = vmatpush1.msra.mxu0 0.0
    %1352 = vmatprep.subr.mxu0 0.0
    %1353 = vmatpush1.msra.mxu0 0.0
    %1354 = vmatprep.subr.mxu0 0.0
    %1355 = vmatpush1.msra.mxu0 0.0
    %1356 = vmatprep.subr.mxu0 0.0
    %1357 = vmatpush1.msra.mxu0 0.0
    %1358 = vmatprep.subr.mxu0 0.0
    %1359 = vmatpush1.msra.mxu0 0.0
    %1360 = vmatprep.subr.mxu0 0.0
    %v1361 = vand.u32 %v875, 4294901760
    %1362 = vmatpush1.msra.mxu0 %v1361
    %1363 = vmatprep.subr.mxu0 0.0
    %v1364 = vand.u32 %v874, 4294901760
    %1365 = vmatpush1.msra.mxu0 %v1364
    %1366 = vmatprep.subr.mxu0 0.0
    %v1367 = vand.u32 %v873, 4294901760
    %1368 = vmatpush1.msra.mxu0 %v1367
    %1369 = vmatprep.subr.mxu0 0.0
    %v1370 = vand.u32 %v872, 4294901760
    %1371 = vmatpush1.msra.mxu0 %v1370
    %1372 = vmatprep.subr.mxu0 0.0
    %v1373 = vand.u32 %v871, 4294901760
    %1374 = vmatpush1.msra.mxu0 %v1373
    %1375 = vmatprep.subr.mxu0 0.0
    %v1376 = vand.u32 %v870, 4294901760
    %1377 = vmatpush1.msra.mxu0 %v1376
    %1378 = vmatprep.subr.mxu0 0.0
    %v1379 = vand.u32 %v869, 4294901760
    %1380 = vmatpush1.msra.mxu0 %v1379
    %1381 = vmatprep.subr.mxu0 0.0
    %v1382 = vand.u32 %v868, 4294901760
    %1383 = vmatpush1.msra.mxu0 %v1382
    %1384 = vmatprep.subr.mxu0 0.0
    %1385 = vmatpush2.msra.mxu0 0.0
    %1386 = vmatprep.subr.mxu0 0.0
    %1387 = vmatpush2.msra.mxu0 0.0
    %1388 = vmatprep.subr.mxu0 0.0
    %1389 = vmatpush2.msra.mxu0 0.0
    %1390 = vmatprep.subr.mxu0 0.0
    %1391 = vmatpush2.msra.mxu0 0.0
    %1392 = vmatprep.subr.mxu0 0.0
    %1393 = vmatpush2.msra.mxu0 0.0
    %1394 = vmatprep.subr.mxu0 0.0
    %1395 = vmatpush2.msra.mxu0 0.0
    %1396 = vmatprep.subr.mxu0 0.0
    %1397 = vmatpush2.msra.mxu0 0.0
    %1398 = vmatprep.subr.mxu0 0.0
    %1399 = vmatpush2.msra.mxu0 0.0
    %1400 = vmatprep.subr.mxu0 0.0
    %1401 = vmatpush2.msra.mxu0 0.0
    %1402 = vmatprep.subr.mxu0 0.0
    %1403 = vmatpush2.msra.mxu0 0.0
    %1404 = vmatprep.subr.mxu0 0.0
    %1405 = vmatpush2.msra.mxu0 0.0
    %1406 = vmatprep.subr.mxu0 0.0
    %1407 = vmatpush2.msra.mxu0 0.0
    %1408 = vmatprep.subr.mxu0 0.0
    %1409 = vmatpush2.msra.mxu0 0.0
    %1410 = vmatprep.subr.mxu0 0.0
    %1411 = vmatpush2.msra.mxu0 0.0
    %1412 = vmatprep.subr.mxu0 0.0
    %1413 = vmatpush2.msra.mxu0 0.0
    %1414 = vmatprep.subr.mxu0 0.0
    %1415 = vmatpush2.msra.mxu0 0.0
    %1416 = vmatprep.mubr.f32.mxu0 0.0
    %v1417 = vand.u32 %v878, 4294901760
    %v1418 = vsub.f32 %v878, %v1417
    %v1419 = vand.u32 %v1418, 4294901760
    %1420 = vmatmul.mubr.f32.gmra.mxu0 %v1419
    %v1421 = vpop.f32.mrf.mxu0
    %v1422 = vadd.f32 %v1292, %v1421
    %v1423 = vpop.f32.mrf.mxu0
    %1424 = vmatprep.mubr.f32.mxu0 0.0
    %v1425 = vand.u32 %v881, 4294901760
    %v1426 = vsub.f32 %v881, %v1425
    %v1427 = vand.u32 %v1426, 4294901760
    %1428 = vmatmul.mubr.f32.gmra.mxu0 %v1427
    %v1429 = vpop.f32.mrf.mxu0
    %v1430 = vadd.f32 %v1299, %v1429
    %v1431 = vpop.f32.mrf.mxu0
    %1432 = vmatprep.mubr.f32.mxu0 0.0
    %v1433 = vand.u32 %v884, 4294901760
    %v1434 = vsub.f32 %v884, %v1433
    %v1435 = vand.u32 %v1434, 4294901760
    %1436 = vmatmul.mubr.f32.gmra.mxu0 %v1435
    %v1437 = vpop.f32.mrf.mxu0
    %v1438 = vadd.f32 %v1306, %v1437
    %v1439 = vpop.f32.mrf.mxu0
    %1440 = vmatprep.mubr.f32.mxu0 0.0
    %v1441 = vand.u32 %v887, 4294901760
    %v1442 = vsub.f32 %v887, %v1441
    %v1443 = vand.u32 %v1442, 4294901760
    %1444 = vmatmul.mubr.f32.gmra.mxu0 %v1443
    %v1445 = vpop.f32.mrf.mxu0
    %v1446 = vadd.f32 %v1313, %v1445
    %v1447 = vpop.f32.mrf.mxu0
    %1448 = vmatprep.mubr.f32.mxu0 0.0
    %v1449 = vand.u32 %v890, 4294901760
    %v1450 = vsub.f32 %v890, %v1449
    %v1451 = vand.u32 %v1450, 4294901760
    %1452 = vmatmul.mubr.f32.gmra.mxu0 %v1451
    %v1453 = vpop.f32.mrf.mxu0
    %v1454 = vadd.f32 %v1320, %v1453
    %v1455 = vpop.f32.mrf.mxu0
    %1456 = vmatprep.mubr.f32.mxu0 0.0
    %v1457 = vand.u32 %v893, 4294901760
    %v1458 = vsub.f32 %v893, %v1457
    %v1459 = vand.u32 %v1458, 4294901760
    %1460 = vmatmul.mubr.f32.gmra.mxu0 %v1459
    %v1461 = vpop.f32.mrf.mxu0
    %v1462 = vadd.f32 %v1327, %v1461
    %v1463 = vpop.f32.mrf.mxu0
    %1464 = vmatprep.mubr.f32.mxu0 0.0
    %v1465 = vand.u32 %v896, 4294901760
    %v1466 = vsub.f32 %v896, %v1465
    %v1467 = vand.u32 %v1466, 4294901760
    %1468 = vmatmul.mubr.f32.gmra.mxu0 %v1467
    %v1469 = vpop.f32.mrf.mxu0
    %v1470 = vadd.f32 %v1334, %v1469
    %v1471 = vpop.f32.mrf.mxu0
    %1472 = vmatprep.mubr.f32.mxu0 0.0
    %v1473 = vand.u32 %v899, 4294901760
    %v1474 = vsub.f32 %v899, %v1473
    %v1475 = vand.u32 %v1474, 4294901760
    %1476 = vmatmul.mubr.f32.gmra.mxu0 %v1475
    %v1477 = vpop.f32.mrf.mxu0
    %v1478 = vadd.f32 %v1341, %v1477
    %v1479 = vpop.f32.mrf.mxu0
    %1480 = vdwg.mxu0
    %1481 = vmatprep.subr.mxu0 0.0
    %1482 = vmatpush1.msra.mxu0 0.0
    %1483 = vmatprep.subr.mxu0 0.0
    %1484 = vmatpush1.msra.mxu0 0.0
    %1485 = vmatprep.subr.mxu0 0.0
    %1486 = vmatpush1.msra.mxu0 0.0
    %1487 = vmatprep.subr.mxu0 0.0
    %1488 = vmatpush1.msra.mxu0 0.0
    %1489 = vmatprep.subr.mxu0 0.0
    %1490 = vmatpush1.msra.mxu0 0.0
    %1491 = vmatprep.subr.mxu0 0.0
    %1492 = vmatpush1.msra.mxu0 0.0
    %1493 = vmatprep.subr.mxu0 0.0
    %1494 = vmatpush1.msra.mxu0 0.0
    %1495 = vmatprep.subr.mxu0 0.0
    %1496 = vmatpush1.msra.mxu0 0.0
    %1497 = vmatprep.subr.mxu0 0.0
    %v1498 = vand.u32 %v875, 4294901760
    %v1499 = vsub.f32 %v875, %v1498
    %v1500 = vand.u32 %v1499, 4294901760
    %1501 = vmatpush1.msra.mxu0 %v1500
    %1502 = vmatprep.subr.mxu0 0.0
    %v1503 = vand.u32 %v874, 4294901760
    %v1504 = vsub.f32 %v874, %v1503
    %v1505 = vand.u32 %v1504, 4294901760
    %1506 = vmatpush1.msra.mxu0 %v1505
    %1507 = vmatprep.subr.mxu0 0.0
    %v1508 = vand.u32 %v873, 4294901760
    %v1509 = vsub.f32 %v873, %v1508
    %v1510 = vand.u32 %v1509, 4294901760
    %1511 = vmatpush1.msra.mxu0 %v1510
    %1512 = vmatprep.subr.mxu0 0.0
    %v1513 = vand.u32 %v872, 4294901760
    %v1514 = vsub.f32 %v872, %v1513
    %v1515 = vand.u32 %v1514, 4294901760
    %1516 = vmatpush1.msra.mxu0 %v1515
    %1517 = vmatprep.subr.mxu0 0.0
    %v1518 = vand.u32 %v871, 4294901760
    %v1519 = vsub.f32 %v871, %v1518
    %v1520 = vand.u32 %v1519, 4294901760
    %1521 = vmatpush1.msra.mxu0 %v1520
    %1522 = vmatprep.subr.mxu0 0.0
    %v1523 = vand.u32 %v870, 4294901760
    %v1524 = vsub.f32 %v870, %v1523
    %v1525 = vand.u32 %v1524, 4294901760
    %1526 = vmatpush1.msra.mxu0 %v1525
    %1527 = vmatprep.subr.mxu0 0.0
    %v1528 = vand.u32 %v869, 4294901760
    %v1529 = vsub.f32 %v869, %v1528
    %v1530 = vand.u32 %v1529, 4294901760
    %1531 = vmatpush1.msra.mxu0 %v1530
    %1532 = vmatprep.subr.mxu0 0.0
    %v1533 = vand.u32 %v868, 4294901760
    %v1534 = vsub.f32 %v868, %v1533
    %v1535 = vand.u32 %v1534, 4294901760
    %1536 = vmatpush1.msra.mxu0 %v1535
    %1537 = vmatprep.subr.mxu0 0.0
    %1538 = vmatpush2.msra.mxu0 0.0
    %1539 = vmatprep.subr.mxu0 0.0
    %1540 = vmatpush2.msra.mxu0 0.0
    %1541 = vmatprep.subr.mxu0 0.0
    %1542 = vmatpush2.msra.mxu0 0.0
    %1543 = vmatprep.subr.mxu0 0.0
    %1544 = vmatpush2.msra.mxu0 0.0
    %1545 = vmatprep.subr.mxu0 0.0
    %1546 = vmatpush2.msra.mxu0 0.0
    %1547 = vmatprep.subr.mxu0 0.0
    %1548 = vmatpush2.msra.mxu0 0.0
    %1549 = vmatprep.subr.mxu0 0.0
    %1550 = vmatpush2.msra.mxu0 0.0
    %1551 = vmatprep.subr.mxu0 0.0
    %1552 = vmatpush2.msra.mxu0 0.0
    %1553 = vmatprep.subr.mxu0 0.0
    %1554 = vmatpush2.msra.mxu0 0.0
    %1555 = vmatprep.subr.mxu0 0.0
    %1556 = vmatpush2.msra.mxu0 0.0
    %1557 = vmatprep.subr.mxu0 0.0
    %1558 = vmatpush2.msra.mxu0 0.0
    %1559 = vmatprep.subr.mxu0 0.0
    %1560 = vmatpush2.msra.mxu0 0.0
    %1561 = vmatprep.subr.mxu0 0.0
    %1562 = vmatpush2.msra.mxu0 0.0
    %1563 = vmatprep.subr.mxu0 0.0
    %1564 = vmatpush2.msra.mxu0 0.0
    %1565 = vmatprep.subr.mxu0 0.0
    %1566 = vmatpush2.msra.mxu0 0.0
    %1567 = vmatprep.subr.mxu0 0.0
    %1568 = vmatpush2.msra.mxu0 0.0
    %1569 = vmatprep.mubr.f32.mxu0 0.0
    %v1570 = vand.u32 %v878, 4294901760
    %1571 = vmatmul.mubr.f32.gmra.mxu0 %v1570
    %v1572 = vpop.f32.mrf.mxu0
    %v1573 = vadd.f32 %v1422, %v1572
    %v1574 = vpop.f32.mrf.mxu0
    %1575 = vmatprep.mubr.f32.mxu0 0.0
    %v1576 = vand.u32 %v881, 4294901760
    %1577 = vmatmul.mubr.f32.gmra.mxu0 %v1576
    %v1578 = vpop.f32.mrf.mxu0
    %v1579 = vadd.f32 %v1430, %v1578
    %v1580 = vpop.f32.mrf.mxu0
    %1581 = vmatprep.mubr.f32.mxu0 0.0
    %v1582 = vand.u32 %v884, 4294901760
    %1583 = vmatmul.mubr.f32.gmra.mxu0 %v1582
    %v1584 = vpop.f32.mrf.mxu0
    %v1585 = vadd.f32 %v1438, %v1584
    %v1586 = vpop.f32.mrf.mxu0
    %1587 = vmatprep.mubr.f32.mxu0 0.0
    %v1588 = vand.u32 %v887, 4294901760
    %1589 = vmatmul.mubr.f32.gmra.mxu0 %v1588
    %v1590 = vpop.f32.mrf.mxu0
    %v1591 = vadd.f32 %v1446, %v1590
    %v1592 = vpop.f32.mrf.mxu0
    %1593 = vmatprep.mubr.f32.mxu0 0.0
    %v1594 = vand.u32 %v890, 4294901760
    %1595 = vmatmul.mubr.f32.gmra.mxu0 %v1594
    %v1596 = vpop.f32.mrf.mxu0
    %v1597 = vadd.f32 %v1454, %v1596
    %v1598 = vpop.f32.mrf.mxu0
    %1599 = vmatprep.mubr.f32.mxu0 0.0
    %v1600 = vand.u32 %v893, 4294901760
    %1601 = vmatmul.mubr.f32.gmra.mxu0 %v1600
    %v1602 = vpop.f32.mrf.mxu0
    %v1603 = vadd.f32 %v1462, %v1602
    %v1604 = vpop.f32.mrf.mxu0
    %1605 = vmatprep.mubr.f32.mxu0 0.0
    %v1606 = vand.u32 %v896, 4294901760
    %1607 = vmatmul.mubr.f32.gmra.mxu0 %v1606
    %v1608 = vpop.f32.mrf.mxu0
    %v1609 = vadd.f32 %v1470, %v1608
    %v1610 = vpop.f32.mrf.mxu0
    %1611 = vmatprep.mubr.f32.mxu0 0.0
    %v1612 = vand.u32 %v899, 4294901760
    %1613 = vmatmul.mubr.f32.gmra.mxu0 %v1612
    %v1614 = vpop.f32.mrf.mxu0
    %v1615 = vadd.f32 %v1478, %v1614
    %v1616 = vpop.f32.mrf.mxu0
    %1617 = vdwg.mxu0
    %1618 = vmatprep.subr.mxu0 0.0
    %1619 = vmatpush1.msra.mxu0 0.0
    %1620 = vmatprep.subr.mxu0 0.0
    %1621 = vmatpush1.msra.mxu0 0.0
    %1622 = vmatprep.subr.mxu0 0.0
    %1623 = vmatpush1.msra.mxu0 0.0
    %1624 = vmatprep.subr.mxu0 0.0
    %1625 = vmatpush1.msra.mxu0 0.0
    %1626 = vmatprep.subr.mxu0 0.0
    %1627 = vmatpush1.msra.mxu0 0.0
    %1628 = vmatprep.subr.mxu0 0.0
    %1629 = vmatpush1.msra.mxu0 0.0
    %1630 = vmatprep.subr.mxu0 0.0
    %1631 = vmatpush1.msra.mxu0 0.0
    %1632 = vmatprep.subr.mxu0 0.0
    %1633 = vmatpush1.msra.mxu0 0.0
    %1634 = vmatprep.subr.mxu0 0.0
    %v1635 = vand.u32 %v875, 4294901760
    %1636 = vmatpush1.msra.mxu0 %v1635
    %1637 = vmatprep.subr.mxu0 0.0
    %v1638 = vand.u32 %v874, 4294901760
    %1639 = vmatpush1.msra.mxu0 %v1638
    %1640 = vmatprep.subr.mxu0 0.0
    %v1641 = vand.u32 %v873, 4294901760
    %1642 = vmatpush1.msra.mxu0 %v1641
    %1643 = vmatprep.subr.mxu0 0.0
    %v1644 = vand.u32 %v872, 4294901760
    %1645 = vmatpush1.msra.mxu0 %v1644
    %1646 = vmatprep.subr.mxu0 0.0
    %v1647 = vand.u32 %v871, 4294901760
    %1648 = vmatpush1.msra.mxu0 %v1647
    %1649 = vmatprep.subr.mxu0 0.0
    %v1650 = vand.u32 %v870, 4294901760
    %1651 = vmatpush1.msra.mxu0 %v1650
    %1652 = vmatprep.subr.mxu0 0.0
    %v1653 = vand.u32 %v869, 4294901760
    %1654 = vmatpush1.msra.mxu0 %v1653
    %1655 = vmatprep.subr.mxu0 0.0
    %v1656 = vand.u32 %v868, 4294901760
    %1657 = vmatpush1.msra.mxu0 %v1656
    %1658 = vmatprep.subr.mxu0 0.0
    %1659 = vmatpush2.msra.mxu0 0.0
    %1660 = vmatprep.subr.mxu0 0.0
    %1661 = vmatpush2.msra.mxu0 0.0
    %1662 = vmatprep.subr.mxu0 0.0
    %1663 = vmatpush2.msra.mxu0 0.0
    %1664 = vmatprep.subr.mxu0 0.0
    %1665 = vmatpush2.msra.mxu0 0.0
    %1666 = vmatprep.subr.mxu0 0.0
    %1667 = vmatpush2.msra.mxu0 0.0
    %1668 = vmatprep.subr.mxu0 0.0
    %1669 = vmatpush2.msra.mxu0 0.0
    %1670 = vmatprep.subr.mxu0 0.0
    %1671 = vmatpush2.msra.mxu0 0.0
    %1672 = vmatprep.subr.mxu0 0.0
    %1673 = vmatpush2.msra.mxu0 0.0
    %1674 = vmatprep.subr.mxu0 0.0
    %1675 = vmatpush2.msra.mxu0 0.0
    %1676 = vmatprep.subr.mxu0 0.0
    %1677 = vmatpush2.msra.mxu0 0.0
    %1678 = vmatprep.subr.mxu0 0.0
    %1679 = vmatpush2.msra.mxu0 0.0
    %1680 = vmatprep.subr.mxu0 0.0
    %1681 = vmatpush2.msra.mxu0 0.0
    %1682 = vmatprep.subr.mxu0 0.0
    %1683 = vmatpush2.msra.mxu0 0.0
    %1684 = vmatprep.subr.mxu0 0.0
    %1685 = vmatpush2.msra.mxu0 0.0
    %1686 = vmatprep.subr.mxu0 0.0
    %1687 = vmatpush2.msra.mxu0 0.0
    %1688 = vmatprep.subr.mxu0 0.0
    %1689 = vmatpush2.msra.mxu0 0.0
    %1690 = vmatprep.mubr.f32.mxu0 0.0
    %v1691 = vand.u32 %v878, 4294901760
    %1692 = vmatmul.mubr.f32.gmra.mxu0 %v1691
    %v1693 = vpop.f32.mrf.mxu0
    %v1694 = vadd.f32 %v1573, %v1693
    %v1695 = vpop.f32.mrf.mxu0
    %1696 = vmatprep.mubr.f32.mxu0 0.0
    %v1697 = vand.u32 %v881, 4294901760
    %1698 = vmatmul.mubr.f32.gmra.mxu0 %v1697
    %v1699 = vpop.f32.mrf.mxu0
    %v1700 = vadd.f32 %v1579, %v1699
    %v1701 = vpop.f32.mrf.mxu0
    %1702 = vmatprep.mubr.f32.mxu0 0.0
    %v1703 = vand.u32 %v884, 4294901760
    %1704 = vmatmul.mubr.f32.gmra.mxu0 %v1703
    %v1705 = vpop.f32.mrf.mxu0
    %v1706 = vadd.f32 %v1585, %v1705
    %v1707 = vpop.f32.mrf.mxu0
    %1708 = vmatprep.mubr.f32.mxu0 0.0
    %v1709 = vand.u32 %v887, 4294901760
    %1710 = vmatmul.mubr.f32.gmra.mxu0 %v1709
    %v1711 = vpop.f32.mrf.mxu0
    %v1712 = vadd.f32 %v1591, %v1711
    %v1713 = vpop.f32.mrf.mxu0
    %1714 = vmatprep.mubr.f32.mxu0 0.0
    %v1715 = vand.u32 %v890, 4294901760
    %1716 = vmatmul.mubr.f32.gmra.mxu0 %v1715
    %v1717 = vpop.f32.mrf.mxu0
    %v1718 = vadd.f32 %v1597, %v1717
    %v1719 = vpop.f32.mrf.mxu0
    %1720 = vmatprep.mubr.f32.mxu0 0.0
    %v1721 = vand.u32 %v893, 4294901760
    %1722 = vmatmul.mubr.f32.gmra.mxu0 %v1721
    %v1723 = vpop.f32.mrf.mxu0
    %v1724 = vadd.f32 %v1603, %v1723
    %v1725 = vpop.f32.mrf.mxu0
    %1726 = vmatprep.mubr.f32.mxu0 0.0
    %v1727 = vand.u32 %v896, 4294901760
    %1728 = vmatmul.mubr.f32.gmra.mxu0 %v1727
    %v1729 = vpop.f32.mrf.mxu0
    %v1730 = vadd.f32 %v1609, %v1729
    %v1731 = vpop.f32.mrf.mxu0
    %1732 = vmatprep.mubr.f32.mxu0 0.0
    %v1733 = vand.u32 %v899, 4294901760
    %1734 = vmatmul.mubr.f32.gmra.mxu0 %v1733
    %v1735 = vpop.f32.mrf.mxu0
    %v1736 = vadd.f32 %v1615, %v1735
    %v1737 = vpop.f32.mrf.mxu0
    %1738 = vdwg.mxu0
    %v1739 = vtanh.pop %v1694
    %v1740 = vtanh.pop %v1700
    %v1741 = vtanh.pop %v1706
    %v1742 = vtanh.pop %v1712
    %v1743 = vtanh.pop %v1718
    %v1744 = vtanh.pop %v1724
    %v1745 = vtanh.pop %v1730
    %v1746 = vtanh.pop %v1736
    %v1747 = vstv %s41
    %v1749 = vsel %vm876, %v40, 0
    %1751 = vmatprep.subr.mxu0 0.0
    %1752 = vmatpush1.msra.mxu0 0.0
    %1753 = vmatprep.subr.mxu0 0.0
    %1754 = vmatpush1.msra.mxu0 0.0
    %1755 = vmatprep.subr.mxu0 0.0
    %1756 = vmatpush1.msra.mxu0 0.0
    %1757 = vmatprep.subr.mxu0 0.0
    %1758 = vmatpush1.msra.mxu0 0.0
    %1759 = vmatprep.subr.mxu0 0.0
    %1760 = vmatpush1.msra.mxu0 0.0
    %1761 = vmatprep.subr.mxu0 0.0
    %1762 = vmatpush1.msra.mxu0 0.0
    %1763 = vmatprep.subr.mxu0 0.0
    %1764 = vmatpush1.msra.mxu0 0.0
    %1765 = vmatprep.subr.mxu0 0.0
    %1766 = vmatpush1.msra.mxu0 0.0
    %1767 = vmatprep.subr.mxu0 0.0
    %v1768 = vand.u32 %v1746, 4294901760
    %1769 = vmatpush1.msra.mxu0 %v1768
    %1770 = vmatprep.subr.mxu0 0.0
    %v1771 = vand.u32 %v1745, 4294901760
    %1772 = vmatpush1.msra.mxu0 %v1771
    %1773 = vmatprep.subr.mxu0 0.0
    %v1774 = vand.u32 %v1744, 4294901760
    %1775 = vmatpush1.msra.mxu0 %v1774
    %1776 = vmatprep.subr.mxu0 0.0
    %v1777 = vand.u32 %v1743, 4294901760
    %1778 = vmatpush1.msra.mxu0 %v1777
    %1779 = vmatprep.subr.mxu0 0.0
    %v1780 = vand.u32 %v1742, 4294901760
    %1781 = vmatpush1.msra.mxu0 %v1780
    %1782 = vmatprep.subr.mxu0 0.0
    %v1783 = vand.u32 %v1741, 4294901760
    %1784 = vmatpush1.msra.mxu0 %v1783
    %1785 = vmatprep.subr.mxu0 0.0
    %v1786 = vand.u32 %v1740, 4294901760
    %1787 = vmatpush1.msra.mxu0 %v1786
    %1788 = vmatprep.subr.mxu0 0.0
    %v1789 = vand.u32 %v1739, 4294901760
    %1790 = vmatpush1.msra.mxu0 %v1789
    %1791 = vmatprep.subr.mxu0 0.0
    %1792 = vmatpush2.msra.mxu0 0.0
    %1793 = vmatprep.subr.mxu0 0.0
    %1794 = vmatpush2.msra.mxu0 0.0
    %1795 = vmatprep.subr.mxu0 0.0
    %1796 = vmatpush2.msra.mxu0 0.0
    %1797 = vmatprep.subr.mxu0 0.0
    %1798 = vmatpush2.msra.mxu0 0.0
    %1799 = vmatprep.subr.mxu0 0.0
    %1800 = vmatpush2.msra.mxu0 0.0
    %1801 = vmatprep.subr.mxu0 0.0
    %1802 = vmatpush2.msra.mxu0 0.0
    %1803 = vmatprep.subr.mxu0 0.0
    %1804 = vmatpush2.msra.mxu0 0.0
    %1805 = vmatprep.subr.mxu0 0.0
    %1806 = vmatpush2.msra.mxu0 0.0
    %1807 = vmatprep.subr.mxu0 0.0
    %1808 = vmatpush2.msra.mxu0 0.0
    %1809 = vmatprep.subr.mxu0 0.0
    %1810 = vmatpush2.msra.mxu0 0.0
    %1811 = vmatprep.subr.mxu0 0.0
    %1812 = vmatpush2.msra.mxu0 0.0
    %1813 = vmatprep.subr.mxu0 0.0
    %1814 = vmatpush2.msra.mxu0 0.0
    %1815 = vmatprep.subr.mxu0 0.0
    %1816 = vmatpush2.msra.mxu0 0.0
    %1817 = vmatprep.subr.mxu0 0.0
    %1818 = vmatpush2.msra.mxu0 0.0
    %1819 = vmatprep.subr.mxu0 0.0
    %1820 = vmatpush2.msra.mxu0 0.0
    %1821 = vmatprep.subr.mxu0 0.0
    %1822 = vmatpush2.msra.mxu0 0.0
    %1823 = vmatprep.mubr.f32.mxu0 0.0
    %v1824 = vand.u32 %v1749, 4294901760
    %v1825 = vsub.f32 %v1749, %v1824
    %v1826 = vand.u32 %v1825, 4294901760
    %v1827 = vsub.f32 %v1825, %v1826
    %v1828 = vand.u32 %v1827, 4294901760
    %1829 = vmatmul.mubr.f32.gmra.mxu0 %v1828
    %v1830 = vpop.f32.mrf.mxu0
    %v1831 = vadd.f32 %v1747, %v1830
    %v1832 = vpop.f32.mrf.mxu0
    %1833 = vdwg.mxu0
    %1834 = vmatprep.subr.mxu0 0.0
    %1835 = vmatpush1.msra.mxu0 0.0
    %1836 = vmatprep.subr.mxu0 0.0
    %1837 = vmatpush1.msra.mxu0 0.0
    %1838 = vmatprep.subr.mxu0 0.0
    %1839 = vmatpush1.msra.mxu0 0.0
    %1840 = vmatprep.subr.mxu0 0.0
    %1841 = vmatpush1.msra.mxu0 0.0
    %1842 = vmatprep.subr.mxu0 0.0
    %1843 = vmatpush1.msra.mxu0 0.0
    %1844 = vmatprep.subr.mxu0 0.0
    %1845 = vmatpush1.msra.mxu0 0.0
    %1846 = vmatprep.subr.mxu0 0.0
    %1847 = vmatpush1.msra.mxu0 0.0
    %1848 = vmatprep.subr.mxu0 0.0
    %1849 = vmatpush1.msra.mxu0 0.0
    %1850 = vmatprep.subr.mxu0 0.0
    %v1851 = vand.u32 %v1746, 4294901760
    %v1852 = vsub.f32 %v1746, %v1851
    %v1853 = vand.u32 %v1852, 4294901760
    %v1854 = vsub.f32 %v1852, %v1853
    %v1855 = vand.u32 %v1854, 4294901760
    %1856 = vmatpush1.msra.mxu0 %v1855
    %1857 = vmatprep.subr.mxu0 0.0
    %v1858 = vand.u32 %v1745, 4294901760
    %v1859 = vsub.f32 %v1745, %v1858
    %v1860 = vand.u32 %v1859, 4294901760
    %v1861 = vsub.f32 %v1859, %v1860
    %v1862 = vand.u32 %v1861, 4294901760
    %1863 = vmatpush1.msra.mxu0 %v1862
    %1864 = vmatprep.subr.mxu0 0.0
    %v1865 = vand.u32 %v1744, 4294901760
    %v1866 = vsub.f32 %v1744, %v1865
    %v1867 = vand.u32 %v1866, 4294901760
    %v1868 = vsub.f32 %v1866, %v1867
    %v1869 = vand.u32 %v1868, 4294901760
    %1870 = vmatpush1.msra.mxu0 %v1869
    %1871 = vmatprep.subr.mxu0 0.0
    %v1872 = vand.u32 %v1743, 4294901760
    %v1873 = vsub.f32 %v1743, %v1872
    %v1874 = vand.u32 %v1873, 4294901760
    %v1875 = vsub.f32 %v1873, %v1874
    %v1876 = vand.u32 %v1875, 4294901760
    %1877 = vmatpush1.msra.mxu0 %v1876
    %1878 = vmatprep.subr.mxu0 0.0
    %v1879 = vand.u32 %v1742, 4294901760
    %v1880 = vsub.f32 %v1742, %v1879
    %v1881 = vand.u32 %v1880, 4294901760
    %v1882 = vsub.f32 %v1880, %v1881
    %v1883 = vand.u32 %v1882, 4294901760
    %1884 = vmatpush1.msra.mxu0 %v1883
    %1885 = vmatprep.subr.mxu0 0.0
    %v1886 = vand.u32 %v1741, 4294901760
    %v1887 = vsub.f32 %v1741, %v1886
    %v1888 = vand.u32 %v1887, 4294901760
    %v1889 = vsub.f32 %v1887, %v1888
    %v1890 = vand.u32 %v1889, 4294901760
    %1891 = vmatpush1.msra.mxu0 %v1890
    %1892 = vmatprep.subr.mxu0 0.0
    %v1893 = vand.u32 %v1740, 4294901760
    %v1894 = vsub.f32 %v1740, %v1893
    %v1895 = vand.u32 %v1894, 4294901760
    %v1896 = vsub.f32 %v1894, %v1895
    %v1897 = vand.u32 %v1896, 4294901760
    %1898 = vmatpush1.msra.mxu0 %v1897
    %1899 = vmatprep.subr.mxu0 0.0
    %v1900 = vand.u32 %v1739, 4294901760
    %v1901 = vsub.f32 %v1739, %v1900
    %v1902 = vand.u32 %v1901, 4294901760
    %v1903 = vsub.f32 %v1901, %v1902
    %v1904 = vand.u32 %v1903, 4294901760
    %1905 = vmatpush1.msra.mxu0 %v1904
    %1906 = vmatprep.subr.mxu0 0.0
    %1907 = vmatpush2.msra.mxu0 0.0
    %1908 = vmatprep.subr.mxu0 0.0
    %1909 = vmatpush2.msra.mxu0 0.0
    %1910 = vmatprep.subr.mxu0 0.0
    %1911 = vmatpush2.msra.mxu0 0.0
    %1912 = vmatprep.subr.mxu0 0.0
    %1913 = vmatpush2.msra.mxu0 0.0
    %1914 = vmatprep.subr.mxu0 0.0
    %1915 = vmatpush2.msra.mxu0 0.0
    %1916 = vmatprep.subr.mxu0 0.0
    %1917 = vmatpush2.msra.mxu0 0.0
    %1918 = vmatprep.subr.mxu0 0.0
    %1919 = vmatpush2.msra.mxu0 0.0
    %1920 = vmatprep.subr.mxu0 0.0
    %1921 = vmatpush2.msra.mxu0 0.0
    %1922 = vmatprep.subr.mxu0 0.0
    %1923 = vmatpush2.msra.mxu0 0.0
    %1924 = vmatprep.subr.mxu0 0.0
    %1925 = vmatpush2.msra.mxu0 0.0
    %1926 = vmatprep.subr.mxu0 0.0
    %1927 = vmatpush2.msra.mxu0 0.0
    %1928 = vmatprep.subr.mxu0 0.0
    %1929 = vmatpush2.msra.mxu0 0.0
    %1930 = vmatprep.subr.mxu0 0.0
    %1931 = vmatpush2.msra.mxu0 0.0
    %1932 = vmatprep.subr.mxu0 0.0
    %1933 = vmatpush2.msra.mxu0 0.0
    %1934 = vmatprep.subr.mxu0 0.0
    %1935 = vmatpush2.msra.mxu0 0.0
    %1936 = vmatprep.subr.mxu0 0.0
    %1937 = vmatpush2.msra.mxu0 0.0
    %1938 = vmatprep.mubr.f32.mxu0 0.0
    %v1939 = vand.u32 %v1749, 4294901760
    %1940 = vmatmul.mubr.f32.gmra.mxu0 %v1939
    %v1941 = vpop.f32.mrf.mxu0
    %v1942 = vadd.f32 %v1831, %v1941
    %v1943 = vpop.f32.mrf.mxu0
    %1944 = vdwg.mxu0
    %1945 = vmatprep.subr.mxu0 0.0
    %1946 = vmatpush1.msra.mxu0 0.0
    %1947 = vmatprep.subr.mxu0 0.0
    %1948 = vmatpush1.msra.mxu0 0.0
    %1949 = vmatprep.subr.mxu0 0.0
    %1950 = vmatpush1.msra.mxu0 0.0
    %1951 = vmatprep.subr.mxu0 0.0
    %1952 = vmatpush1.msra.mxu0 0.0
    %1953 = vmatprep.subr.mxu0 0.0
    %1954 = vmatpush1.msra.mxu0 0.0
    %1955 = vmatprep.subr.mxu0 0.0
    %1956 = vmatpush1.msra.mxu0 0.0
    %1957 = vmatprep.subr.mxu0 0.0
    %1958 = vmatpush1.msra.mxu0 0.0
    %1959 = vmatprep.subr.mxu0 0.0
    %1960 = vmatpush1.msra.mxu0 0.0
    %1961 = vmatprep.subr.mxu0 0.0
    %v1962 = vand.u32 %v1746, 4294901760
    %v1963 = vsub.f32 %v1746, %v1962
    %1964 = vmatpush1.msra.mxu0 %v1963
    %1965 = vmatprep.subr.mxu0 0.0
    %v1966 = vand.u32 %v1745, 4294901760
    %v1967 = vsub.f32 %v1745, %v1966
    %1968 = vmatpush1.msra.mxu0 %v1967
    %1969 = vmatprep.subr.mxu0 0.0
    %v1970 = vand.u32 %v1744, 4294901760
    %v1971 = vsub.f32 %v1744, %v1970
    %1972 = vmatpush1.msra.mxu0 %v1971
    %1973 = vmatprep.subr.mxu0 0.0
    %v1974 = vand.u32 %v1743, 4294901760
    %v1975 = vsub.f32 %v1743, %v1974
    %1976 = vmatpush1.msra.mxu0 %v1975
    %1977 = vmatprep.subr.mxu0 0.0
    %v1978 = vand.u32 %v1742, 4294901760
    %v1979 = vsub.f32 %v1742, %v1978
    %1980 = vmatpush1.msra.mxu0 %v1979
    %1981 = vmatprep.subr.mxu0 0.0
    %v1982 = vand.u32 %v1741, 4294901760
    %v1983 = vsub.f32 %v1741, %v1982
    %1984 = vmatpush1.msra.mxu0 %v1983
    %1985 = vmatprep.subr.mxu0 0.0
    %v1986 = vand.u32 %v1740, 4294901760
    %v1987 = vsub.f32 %v1740, %v1986
    %1988 = vmatpush1.msra.mxu0 %v1987
    %1989 = vmatprep.subr.mxu0 0.0
    %v1990 = vand.u32 %v1739, 4294901760
    %v1991 = vsub.f32 %v1739, %v1990
    %1992 = vmatpush1.msra.mxu0 %v1991
    %1993 = vmatprep.subr.mxu0 0.0
    %1994 = vmatpush2.msra.mxu0 0.0
    %1995 = vmatprep.subr.mxu0 0.0
    %1996 = vmatpush2.msra.mxu0 0.0
    %1997 = vmatprep.subr.mxu0 0.0
    %1998 = vmatpush2.msra.mxu0 0.0
    %1999 = vmatprep.subr.mxu0 0.0
    %2000 = vmatpush2.msra.mxu0 0.0
    %2001 = vmatprep.subr.mxu0 0.0
    %2002 = vmatpush2.msra.mxu0 0.0
    %2003 = vmatprep.subr.mxu0 0.0
    %2004 = vmatpush2.msra.mxu0 0.0
    %2005 = vmatprep.subr.mxu0 0.0
    %2006 = vmatpush2.msra.mxu0 0.0
    %2007 = vmatprep.subr.mxu0 0.0
    %2008 = vmatpush2.msra.mxu0 0.0
    %2009 = vmatprep.subr.mxu0 0.0
    %2010 = vmatpush2.msra.mxu0 0.0
    %2011 = vmatprep.subr.mxu0 0.0
    %2012 = vmatpush2.msra.mxu0 0.0
    %2013 = vmatprep.subr.mxu0 0.0
    %2014 = vmatpush2.msra.mxu0 0.0
    %2015 = vmatprep.subr.mxu0 0.0
    %2016 = vmatpush2.msra.mxu0 0.0
    %2017 = vmatprep.subr.mxu0 0.0
    %2018 = vmatpush2.msra.mxu0 0.0
    %2019 = vmatprep.subr.mxu0 0.0
    %2020 = vmatpush2.msra.mxu0 0.0
    %2021 = vmatprep.subr.mxu0 0.0
    %2022 = vmatpush2.msra.mxu0 0.0
    %2023 = vmatprep.subr.mxu0 0.0
    %2024 = vmatpush2.msra.mxu0 0.0
    %2025 = vmatprep.mubr.f32.mxu0 0.0
    %v2026 = vand.u32 %v1749, 4294901760
    %v2027 = vsub.f32 %v1749, %v2026
    %2028 = vmatmul.mubr.f32.gmra.mxu0 %v2027
    %v2029 = vpop.f32.mrf.mxu0
    %v2030 = vadd.f32 %v1942, %v2029
    %v2031 = vpop.f32.mrf.mxu0
    %2032 = vdwg.mxu0
    %2033 = vmatprep.subr.mxu0 0.0
    %2034 = vmatpush1.msra.mxu0 0.0
    %2035 = vmatprep.subr.mxu0 0.0
    %2036 = vmatpush1.msra.mxu0 0.0
    %2037 = vmatprep.subr.mxu0 0.0
    %2038 = vmatpush1.msra.mxu0 0.0
    %2039 = vmatprep.subr.mxu0 0.0
    %2040 = vmatpush1.msra.mxu0 0.0
    %2041 = vmatprep.subr.mxu0 0.0
    %2042 = vmatpush1.msra.mxu0 0.0
    %2043 = vmatprep.subr.mxu0 0.0
    %2044 = vmatpush1.msra.mxu0 0.0
    %2045 = vmatprep.subr.mxu0 0.0
    %2046 = vmatpush1.msra.mxu0 0.0
    %2047 = vmatprep.subr.mxu0 0.0
    %2048 = vmatpush1.msra.mxu0 0.0
    %2049 = vmatprep.subr.mxu0 0.0
    %v2050 = vand.u32 %v1746, 4294901760
    %2051 = vmatpush1.msra.mxu0 %v2050
    %2052 = vmatprep.subr.mxu0 0.0
    %v2053 = vand.u32 %v1745, 4294901760
    %2054 = vmatpush1.msra.mxu0 %v2053
    %2055 = vmatprep.subr.mxu0 0.0
    %v2056 = vand.u32 %v1744, 4294901760
    %2057 = vmatpush1.msra.mxu0 %v2056
    %2058 = vmatprep.subr.mxu0 0.0
    %v2059 = vand.u32 %v1743, 4294901760
    %2060 = vmatpush1.msra.mxu0 %v2059
    %2061 = vmatprep.subr.mxu0 0.0
    %v2062 = vand.u32 %v1742, 4294901760
    %2063 = vmatpush1.msra.mxu0 %v2062
    %2064 = vmatprep.subr.mxu0 0.0
    %v2065 = vand.u32 %v1741, 4294901760
    %2066 = vmatpush1.msra.mxu0 %v2065
    %2067 = vmatprep.subr.mxu0 0.0
    %v2068 = vand.u32 %v1740, 4294901760
    %2069 = vmatpush1.msra.mxu0 %v2068
    %2070 = vmatprep.subr.mxu0 0.0
    %v2071 = vand.u32 %v1739, 4294901760
    %2072 = vmatpush1.msra.mxu0 %v2071
    %2073 = vmatprep.subr.mxu0 0.0
    %2074 = vmatpush2.msra.mxu0 0.0
    %2075 = vmatprep.subr.mxu0 0.0
    %2076 = vmatpush2.msra.mxu0 0.0
    %2077 = vmatprep.subr.mxu0 0.0
    %2078 = vmatpush2.msra.mxu0 0.0
    %2079 = vmatprep.subr.mxu0 0.0
    %2080 = vmatpush2.msra.mxu0 0.0
    %2081 = vmatprep.subr.mxu0 0.0
    %2082 = vmatpush2.msra.mxu0 0.0
    %2083 = vmatprep.subr.mxu0 0.0
    %2084 = vmatpush2.msra.mxu0 0.0
    %2085 = vmatprep.subr.mxu0 0.0
    %2086 = vmatpush2.msra.mxu0 0.0
    %2087 = vmatprep.subr.mxu0 0.0
    %2088 = vmatpush2.msra.mxu0 0.0
    %2089 = vmatprep.subr.mxu0 0.0
    %2090 = vmatpush2.msra.mxu0 0.0
    %2091 = vmatprep.subr.mxu0 0.0
    %2092 = vmatpush2.msra.mxu0 0.0
    %2093 = vmatprep.subr.mxu0 0.0
    %2094 = vmatpush2.msra.mxu0 0.0
    %2095 = vmatprep.subr.mxu0 0.0
    %2096 = vmatpush2.msra.mxu0 0.0
    %2097 = vmatprep.subr.mxu0 0.0
    %2098 = vmatpush2.msra.mxu0 0.0
    %2099 = vmatprep.subr.mxu0 0.0
    %2100 = vmatpush2.msra.mxu0 0.0
    %2101 = vmatprep.subr.mxu0 0.0
    %2102 = vmatpush2.msra.mxu0 0.0
    %2103 = vmatprep.subr.mxu0 0.0
    %2104 = vmatpush2.msra.mxu0 0.0
    %2105 = vmatprep.mubr.f32.mxu0 0.0
    %v2106 = vand.u32 %v1749, 4294901760
    %v2107 = vsub.f32 %v1749, %v2106
    %v2108 = vand.u32 %v2107, 4294901760
    %2109 = vmatmul.mubr.f32.gmra.mxu0 %v2108
    %v2110 = vpop.f32.mrf.mxu0
    %v2111 = vadd.f32 %v2030, %v2110
    %v2112 = vpop.f32.mrf.mxu0
    %2113 = vdwg.mxu0
    %2114 = vmatprep.subr.mxu0 0.0
    %2115 = vmatpush1.msra.mxu0 0.0
    %2116 = vmatprep.subr.mxu0 0.0
    %2117 = vmatpush1.msra.mxu0 0.0
    %2118 = vmatprep.subr.mxu0 0.0
    %2119 = vmatpush1.msra.mxu0 0.0
    %2120 = vmatprep.subr.mxu0 0.0
    %2121 = vmatpush1.msra.mxu0 0.0
    %2122 = vmatprep.subr.mxu0 0.0
    %2123 = vmatpush1.msra.mxu0 0.0
    %2124 = vmatprep.subr.mxu0 0.0
    %2125 = vmatpush1.msra.mxu0 0.0
    %2126 = vmatprep.subr.mxu0 0.0
    %2127 = vmatpush1.msra.mxu0 0.0
    %2128 = vmatprep.subr.mxu0 0.0
    %2129 = vmatpush1.msra.mxu0 0.0
    %2130 = vmatprep.subr.mxu0 0.0
    %v2131 = vand.u32 %v1746, 4294901760
    %v2132 = vsub.f32 %v1746, %v2131
    %v2133 = vand.u32 %v2132, 4294901760
    %2134 = vmatpush1.msra.mxu0 %v2133
    %2135 = vmatprep.subr.mxu0 0.0
    %v2136 = vand.u32 %v1745, 4294901760
    %v2137 = vsub.f32 %v1745, %v2136
    %v2138 = vand.u32 %v2137, 4294901760
    %2139 = vmatpush1.msra.mxu0 %v2138
    %2140 = vmatprep.subr.mxu0 0.0
    %v2141 = vand.u32 %v1744, 4294901760
    %v2142 = vsub.f32 %v1744, %v2141
    %v2143 = vand.u32 %v2142, 4294901760
    %2144 = vmatpush1.msra.mxu0 %v2143
    %2145 = vmatprep.subr.mxu0 0.0
    %v2146 = vand.u32 %v1743, 4294901760
    %v2147 = vsub.f32 %v1743, %v2146
    %v2148 = vand.u32 %v2147, 4294901760
    %2149 = vmatpush1.msra.mxu0 %v2148
    %2150 = vmatprep.subr.mxu0 0.0
    %v2151 = vand.u32 %v1742, 4294901760
    %v2152 = vsub.f32 %v1742, %v2151
    %v2153 = vand.u32 %v2152, 4294901760
    %2154 = vmatpush1.msra.mxu0 %v2153
    %2155 = vmatprep.subr.mxu0 0.0
    %v2156 = vand.u32 %v1741, 4294901760
    %v2157 = vsub.f32 %v1741, %v2156
    %v2158 = vand.u32 %v2157, 4294901760
    %2159 = vmatpush1.msra.mxu0 %v2158
    %2160 = vmatprep.subr.mxu0 0.0
    %v2161 = vand.u32 %v1740, 4294901760
    %v2162 = vsub.f32 %v1740, %v2161
    %v2163 = vand.u32 %v2162, 4294901760
    %2164 = vmatpush1.msra.mxu0 %v2163
    %2165 = vmatprep.subr.mxu0 0.0
    %v2166 = vand.u32 %v1739, 4294901760
    %v2167 = vsub.f32 %v1739, %v2166
    %v2168 = vand.u32 %v2167, 4294901760
    %2169 = vmatpush1.msra.mxu0 %v2168
    %2170 = vmatprep.subr.mxu0 0.0
    %2171 = vmatpush2.msra.mxu0 0.0
    %2172 = vmatprep.subr.mxu0 0.0
    %2173 = vmatpush2.msra.mxu0 0.0
    %2174 = vmatprep.subr.mxu0 0.0
    %2175 = vmatpush2.msra.mxu0 0.0
    %2176 = vmatprep.subr.mxu0 0.0
    %2177 = vmatpush2.msra.mxu0 0.0
    %2178 = vmatprep.subr.mxu0 0.0
    %2179 = vmatpush2.msra.mxu0 0.0
    %2180 = vmatprep.subr.mxu0 0.0
    %2181 = vmatpush2.msra.mxu0 0.0
    %2182 = vmatprep.subr.mxu0 0.0
    %2183 = vmatpush2.msra.mxu0 0.0
    %2184 = vmatprep.subr.mxu0 0.0
    %2185 = vmatpush2.msra.mxu0 0.0
    %2186 = vmatprep.subr.mxu0 0.0
    %2187 = vmatpush2.msra.mxu0 0.0
    %2188 = vmatprep.subr.mxu0 0.0
    %2189 = vmatpush2.msra.mxu0 0.0
    %2190 = vmatprep.subr.mxu0 0.0
    %2191 = vmatpush2.msra.mxu0 0.0
    %2192 = vmatprep.subr.mxu0 0.0
    %2193 = vmatpush2.msra.mxu0 0.0
    %2194 = vmatprep.subr.mxu0 0.0
    %2195 = vmatpush2.msra.mxu0 0.0
    %2196 = vmatprep.subr.mxu0 0.0
    %2197 = vmatpush2.msra.mxu0 0.0
    %2198 = vmatprep.subr.mxu0 0.0
    %2199 = vmatpush2.msra.mxu0 0.0
    %2200 = vmatprep.subr.mxu0 0.0
    %2201 = vmatpush2.msra.mxu0 0.0
    %2202 = vmatprep.mubr.f32.mxu0 0.0
    %v2203 = vand.u32 %v1749, 4294901760
    %2204 = vmatmul.mubr.f32.gmra.mxu0 %v2203
    %v2205 = vpop.f32.mrf.mxu0
    %v2206 = vadd.f32 %v2111, %v2205
    %v2207 = vpop.f32.mrf.mxu0
    %2208 = vdwg.mxu0
    %2209 = vmatprep.subr.mxu0 0.0
    %2210 = vmatpush1.msra.mxu0 0.0
    %2211 = vmatprep.subr.mxu0 0.0
    %2212 = vmatpush1.msra.mxu0 0.0
    %2213 = vmatprep.subr.mxu0 0.0
    %2214 = vmatpush1.msra.mxu0 0.0
    %2215 = vmatprep.subr.mxu0 0.0
    %2216 = vmatpush1.msra.mxu0 0.0
    %2217 = vmatprep.subr.mxu0 0.0
    %2218 = vmatpush1.msra.mxu0 0.0
    %2219 = vmatprep.subr.mxu0 0.0
    %2220 = vmatpush1.msra.mxu0 0.0
    %2221 = vmatprep.subr.mxu0 0.0
    %2222 = vmatpush1.msra.mxu0 0.0
    %2223 = vmatprep.subr.mxu0 0.0
    %2224 = vmatpush1.msra.mxu0 0.0
    %2225 = vmatprep.subr.mxu0 0.0
    %v2226 = vand.u32 %v1746, 4294901760
    %2227 = vmatpush1.msra.mxu0 %v2226
    %2228 = vmatprep.subr.mxu0 0.0
    %v2229 = vand.u32 %v1745, 4294901760
    %2230 = vmatpush1.msra.mxu0 %v2229
    %2231 = vmatprep.subr.mxu0 0.0
    %v2232 = vand.u32 %v1744, 4294901760
    %2233 = vmatpush1.msra.mxu0 %v2232
    %2234 = vmatprep.subr.mxu0 0.0
    %v2235 = vand.u32 %v1743, 4294901760
    %2236 = vmatpush1.msra.mxu0 %v2235
    %2237 = vmatprep.subr.mxu0 0.0
    %v2238 = vand.u32 %v1742, 4294901760
    %2239 = vmatpush1.msra.mxu0 %v2238
    %2240 = vmatprep.subr.mxu0 0.0
    %v2241 = vand.u32 %v1741, 4294901760
    %2242 = vmatpush1.msra.mxu0 %v2241
    %2243 = vmatprep.subr.mxu0 0.0
    %v2244 = vand.u32 %v1740, 4294901760
    %2245 = vmatpush1.msra.mxu0 %v2244
    %2246 = vmatprep.subr.mxu0 0.0
    %v2247 = vand.u32 %v1739, 4294901760
    %2248 = vmatpush1.msra.mxu0 %v2247
    %2249 = vmatprep.subr.mxu0 0.0
    %2250 = vmatpush2.msra.mxu0 0.0
    %2251 = vmatprep.subr.mxu0 0.0
    %2252 = vmatpush2.msra.mxu0 0.0
    %2253 = vmatprep.subr.mxu0 0.0
    %2254 = vmatpush2.msra.mxu0 0.0
    %2255 = vmatprep.subr.mxu0 0.0
    %2256 = vmatpush2.msra.mxu0 0.0
    %2257 = vmatprep.subr.mxu0 0.0
    %2258 = vmatpush2.msra.mxu0 0.0
    %2259 = vmatprep.subr.mxu0 0.0
    %2260 = vmatpush2.msra.mxu0 0.0
    %2261 = vmatprep.subr.mxu0 0.0
    %2262 = vmatpush2.msra.mxu0 0.0
    %2263 = vmatprep.subr.mxu0 0.0
    %2264 = vmatpush2.msra.mxu0 0.0
    %2265 = vmatprep.subr.mxu0 0.0
    %2266 = vmatpush2.msra.mxu0 0.0
    %2267 = vmatprep.subr.mxu0 0.0
    %2268 = vmatpush2.msra.mxu0 0.0
    %2269 = vmatprep.subr.mxu0 0.0
    %2270 = vmatpush2.msra.mxu0 0.0
    %2271 = vmatprep.subr.mxu0 0.0
    %2272 = vmatpush2.msra.mxu0 0.0
    %2273 = vmatprep.subr.mxu0 0.0
    %2274 = vmatpush2.msra.mxu0 0.0
    %2275 = vmatprep.subr.mxu0 0.0
    %2276 = vmatpush2.msra.mxu0 0.0
    %2277 = vmatprep.subr.mxu0 0.0
    %2278 = vmatpush2.msra.mxu0 0.0
    %2279 = vmatprep.subr.mxu0 0.0
    %2280 = vmatpush2.msra.mxu0 0.0
    %2281 = vmatprep.mubr.f32.mxu0 0.0
    %v2282 = vand.u32 %v1749, 4294901760
    %2283 = vmatmul.mubr.f32.gmra.mxu0 %v2282
    %v2284 = vpop.f32.mrf.mxu0
    %v2285 = vadd.f32 %v2206, %v2284
    %v2286 = vpop.f32.mrf.mxu0
    %2287 = vdwg.mxu0
    %2288 = vst [vmem:[%s6] sm:$0x1] %v2285
  $region29: #{travel_time_fcnn.1} parent=0 // pred_fallthru
    _
  // Predicated region
  $region30: #{travel_time_fcnn.1} parent=0 // pred_check
    _
  $region31: #{travel_time_fcnn.1} parent=0 // pred_check_branch
    %2290 = sbr.rel (0) target = $region33
  $region32: #{travel_time_fcnn.1} parent=0 // pred_region
    _
  $region33: #{travel_time_fcnn.1} parent=0 // pred_fallthru
    _
  // Predicated region
  $region34: #{travel_time_fcnn.1} parent=0 // pred_check
    _
  $region35: #{travel_time_fcnn.1} parent=0 // pred_check_branch
    %2292 = sbr.rel (0) target = $region37
  $region36: #{travel_time_fcnn.1} parent=0 // pred_region
    _
  $region37: #{travel_time_fcnn.1} parent=0 // pred_fallthru
    _

</llo_original>
